<compile_context>
chip_gen: v7x
topology: tpu7x:2x2x1
jax: 0.10.0
libtpu: 0.0.40
codegen_flags: <defaults>
</compile_context>

<pallas_src>
import functools

import jax
import jax.numpy as jnp
from jax import lax
from jax.experimental import pallas as pl
from jax.experimental.pallas import tpu as pltpu


# ----------------------------- helpers ------------------------------------------------

def _round_up(x, m):
    return ((x + m - 1) // m) * m


def _pad_to(a, shape):
    pads = [(0, t - s) for s, t in zip(a.shape, shape)]
    if all(p == (0, 0) for p in pads):
        return a
    return jnp.pad(a, pads)


def _default_tile_hw():
    """HW tile: 512 on v5e/v6e (128 MiB VMEM), 256 on v7x-class chips (64 MiB)."""
    try:
        if pltpu.get_tpu_info().vmem_capacity_bytes <= 64 * 1024 * 1024:
            return 256
    except Exception:
        pass
    return 512


# ----------------------------- Pallas kernel ------------------------------------------

def _ocr_kernel(m_valid,
                x_ref, kt_ref, v_ref,
                wp1_ref, bp1_ref, wp2_ref, bp2_ref,   # f_pixel (scale pre-folded)
                wu_ref, bu_ref,                        # f_up
                wcc_ref, wcx_ref, bc_ref,              # conv_bn_dropout (split on concat)
                out_ref):
    relu = lambda t: jnp.maximum(t, 0.0)

    x = x_ref[...]                                     # (T_HW, C)   bf16
    kt = kt_ref[...]                                   # (Kp, Mp)    bf16 (precomputed key^T)
    v = v_ref[...]                                     # (Mp, Kp)    bf16 (precomputed value)

    # f_pixel: conv1x1->BN->ReLU -> conv1x1->BN->ReLU    => query (T_HW, Kp)
    # (key_channels**-0.5 is folded into wp2 / bp2 in the wrapper.)
    q = relu(jnp.dot(x, wp1_ref[...], preferred_element_type=jnp.float32) + bp1_ref[...])
    q = relu(jnp.dot(q.astype(wp2_ref.dtype), wp2_ref[...],
                     preferred_element_type=jnp.float32) + bp2_ref[...])

    # sim_map = softmax(query @ key^T) over the proxy axis; key is pre-transposed.
    sim = jnp.dot(q.astype(kt.dtype), kt, preferred_element_type=jnp.float32)   # (T_HW, Mp)
    sim = sim - jnp.max(sim, axis=-1, keepdims=True)
    e = jnp.exp(sim)
    if m_valid < e.shape[-1]:                          # mask padded proxy positions (static)
        col = lax.broadcasted_iota(jnp.int32, e.shape, 1)
        e = jnp.where(col < m_valid, e, 0.0)
    attn = e * pl.reciprocal(jnp.sum(e, axis=-1, keepdims=True), approx=True)

    # context = attn @ value                            => (T_HW, Kp)
    ctx = jnp.dot(attn.astype(v.dtype), v, preferred_element_type=jnp.float32)

    # f_up: conv1x1 -> BN -> ReLU                       => (T_HW, C)
    ctx = relu(jnp.dot(ctx.astype(wu_ref.dtype), wu_ref[...],
                       preferred_element_type=jnp.float32) + bu_ref[...])

    # conv_bn_dropout on concat([context, feats], channel), split-weight form:
    #   concat @ W == ctx @ W[:C] + x @ W[C:]
    out = (jnp.dot(ctx.astype(wcc_ref.dtype), wcc_ref[...], preferred_element_type=jnp.float32)
           + jnp.dot(x, wcx_ref[...], preferred_element_type=jnp.float32)
           + bc_ref[...])
    out_ref[...] = relu(out).astype(out_ref.dtype)     # Dropout2d is identity in eval mode


# ----------------------------- wrapper -------------------------------------------------

def spatial_ocr_forward(feats_nchw, proxy_nchw, params, key_channels,
                        *, tile_hw=None, compute_dtype=jnp.bfloat16):
    N, C, H, W = feats_nchw.shape
    _, _, Hp, Wp = proxy_nchw.shape
    HW, M = H * W, Hp * Wp

    (wp1, bp1, wp2, bp2, wo1, bo1, wo2, bo2,
     wd, bd, wu, bu, wcc, wcx, bc) = params
    K = wp1.shape[1]
    O = wcc.shape[1]

    # Lane-dense padded sizes (no-ops at production OCR channel counts).
    Kp = _round_up(K, 128)
    Op = _round_up(O, 128)
    Mp = _round_up(M, 128)

    relu = lambda t: jnp.maximum(t, 0.0)

    # Channels-last, flattened inputs.
    x = jnp.transpose(feats_nchw, (0, 2, 3, 1)).reshape(N, HW, C).astype(compute_dtype)
    p = jnp.transpose(proxy_nchw, (0, 2, 3, 1)).reshape(N, M, C)

    # Hoisted proxy-side transforms (f_object / f_down): once per image, tiny matmuls.
    key = relu(relu(p @ wo1 + bo1) @ wo2 + bo2)        # (N, M, K)
    val = relu(p @ wd + bd)                            # (N, M, K)
    key_t = jnp.swapaxes(_pad_to(key, (N, Mp, Kp)), 1, 2).astype(compute_dtype)  # (N, Kp, Mp)
    val = _pad_to(val, (N, Mp, Kp)).astype(compute_dtype)                        # (N, Mp, Kp)

    # Fold the attention scale into f_pixel's 2nd conv (ReLU commutes with s > 0).
    scale = key_channels ** -0.5
    wp2_s, bp2_s = wp2 * scale, bp2 * scale

    # Pad weights / biases to lane-dense shapes; cast matmul weights to bf16.
    wp1_p = _pad_to(wp1, (C, Kp)).astype(compute_dtype)
    bp1_p = _pad_to(bp1, (1, Kp))
    wp2_p = _pad_to(wp2_s, (Kp, Kp)).astype(compute_dtype)
    bp2_p = _pad_to(bp2_s, (1, Kp))
    wu_p = _pad_to(wu, (Kp, C)).astype(compute_dtype)
    bu_p = bu
    wcc_p = _pad_to(wcc, (C, Op)).astype(compute_dtype)
    wcx_p = _pad_to(wcx, (C, Op)).astype(compute_dtype)
    bc_p = _pad_to(bc, (1, Op))

    # Spatial tiling.
    if tile_hw is None:
        tile_hw = _default_tile_hw()
    tile_hw = min(tile_hw, HW)
    if tile_hw != HW:
        tile_hw = max(8, (tile_hw // 8) * 8)
    n_hw = pl.cdiv(HW, tile_hw)

    def w_spec(a):
        return pl.BlockSpec(a.shape, lambda b, t: (0, 0))

    out_flat = pl.pallas_call(
        functools.partial(_ocr_kernel, M),
        out_shape=jax.ShapeDtypeStruct((N, HW, Op), jnp.float32),
        grid=(N, n_hw),
        in_specs=[
            pl.BlockSpec((pl.Squeezed(), tile_hw, C), lambda b, t: (b, t, 0)),   # x tile
            pl.BlockSpec((pl.Squeezed(), Kp, Mp), lambda b, t: (b, 0, 0)),       # key^T
            pl.BlockSpec((pl.Squeezed(), Mp, Kp), lambda b, t: (b, 0, 0)),       # value
            w_spec(wp1_p), w_spec(bp1_p), w_spec(wp2_p), w_spec(bp2_p),
            w_spec(wu_p), w_spec(bu_p),
            w_spec(wcc_p), w_spec(wcx_p), w_spec(bc_p),
        ],
        out_specs=pl.BlockSpec((pl.Squeezed(), tile_hw, Op), lambda b, t: (b, t, 0)),
        compiler_params=pltpu.CompilerParams(
            dimension_semantics=("parallel", "parallel"),
            vmem_limit_bytes=48 * 1024 * 1024,
        ),
    )(x, key_t, val, wp1_p, bp1_p, wp2_p, bp2_p, wu_p, bu_p, wcc_p, wcx_p, bc_p)

    out = out_flat[..., :O].reshape(N, H, W, O).transpose(0, 3, 1, 2)   # back to NCHW
    return out


# ----------------------- parameter construction (synthetic, deterministic) ------------

def _fold_conv_bn(key, cin, cout, eps=1e-5):
    """Conv2d(cin->cout, 1x1, bias=False) + BatchNorm2d(cout) (eval) folded to affine."""
    k1, k2, k3, k4, k5 = jax.random.split(key, 5)
    w = jax.random.normal(k1, (cout, cin), jnp.float32) / jnp.sqrt(float(cin))
    gamma = jax.random.uniform(k2, (cout,), jnp.float32, 0.5, 1.5)
    beta = 0.1 * jax.random.normal(k3, (cout,), jnp.float32)
    mean = 0.1 * jax.random.normal(k4, (cout,), jnp.float32)
    var = jax.random.uniform(k5, (cout,), jnp.float32, 0.5, 1.5)
    s = gamma / jnp.sqrt(var + eps)
    w_eff = w.T * s[None, :]            # (cin, cout)
    b_eff = (beta - mean * s)[None, :]  # (1, cout)
    return w_eff, b_eff


def make_params(key, in_channels, key_channels, out_channels):
    C, K, O = in_channels, key_channels, out_channels
    ks = jax.random.split(key, 7)
    wp1, bp1 = _fold_conv_bn(ks[0], C, K)
    wp2, bp2 = _fold_conv_bn(ks[1], K, K)
    wo1, bo1 = _fold_conv_bn(ks[2], C, K)
    wo2, bo2 = _fold_conv_bn(ks[3], K, K)
    wd, bd = _fold_conv_bn(ks[4], C, K)
    wu, bu = _fold_conv_bn(ks[5], K, C)
    wcat, bc = _fold_conv_bn(ks[6], 2 * C, O)   # rows 0..C-1 -> context, C..2C-1 -> feats
    wcc, wcx = wcat[:C], wcat[C:]
    return (wp1, bp1, wp2, bp2, wo1, bo1, wo2, bo2, wd, bd, wu, bu, wcc, wcx, bc)


# ----------------------- pure-JAX reference (correctness check) ------------------------

def ref_forward(feats, proxy, params, key_channels):
    (wp1, bp1, wp2, bp2, wo1, bo1, wo2, bo2, wd, bd, wu, bu, wcc, wcx, bc) = params
    N, C, H, W = feats.shape
    relu = lambda t: jnp.maximum(t, 0.0)
    x = jnp.transpose(feats, (0, 2, 3, 1)).reshape(N, H * W, C)
    p = jnp.transpose(proxy, (0, 2, 3, 1)).reshape(N, -1, C)
    q = relu(relu(x @ wp1 + bp1) @ wp2 + bp2)
    k = relu(relu(p @ wo1 + bo1) @ wo2 + bo2)
    v = relu(p @ wd + bd)
    sim = jnp.einsum("nqc,nmc->nqm", q, k) * (key_channels ** -0.5)
    attn = jax.nn.softmax(sim, axis=-1)
    ctx = jnp.einsum("nqm,nmc->nqc", attn, v)
    ctx = relu(ctx @ wu + bu)
    out = relu(ctx @ wcc + x @ wcx + bc)
    return out.reshape(N, H, W, -1).transpose(0, 3, 1, 2)


if __name__ == "__main__":
    # Small, module-consistent shapes.
    in_channels, key_channels, out_channels = 32, 16, 32
    N, H, W = 2, 16, 16
    M = 8  # number of "object regions" in the proxy (proxy spatial = M x 1)

    root = jax.random.PRNGKey(0)
    kf, kp, kw = jax.random.split(root, 3)
    feats = jax.random.normal(kf, (N, in_channels, H, W), jnp.float32)        # NCHW
    proxy = jax.random.normal(kp, (N, in_channels, M, 1), jnp.float32)        # NCHW proxy
    params = make_params(kw, in_channels, key_channels, out_channels)

    out = spatial_ocr_forward(feats, proxy, params, key_channels)
    jax.block_until_ready(out)

    assert out.shape == (N, out_channels, H, W)
    assert bool(jnp.all(jnp.isfinite(out)))

    ref = ref_forward(feats, proxy, params, key_channels)
    # bf16 MXU compute + approx reciprocal: check max error relative to output scale.
    max_err = float(jnp.max(jnp.abs(out - ref)))
    ref_scale = float(jnp.max(jnp.abs(ref)))
    assert max_err <= 5e-2 * max(ref_scale, 1.0), (max_err, ref_scale)

    print("KERNEL_OK")
</pallas_src>

<mosaic_0001>
module attributes {stable_mosaic.version = 11 : i64} {
  func.func @_ocr_kernel(%arg0: i32, %arg1: i32, %arg2: memref<1x256x32xbf16, #tpu.memory_space<vmem>>, %arg3: memref<1x128x128xbf16, #tpu.memory_space<vmem>>, %arg4: memref<1x128x128xbf16, #tpu.memory_space<vmem>>, %arg5: memref<32x128xbf16, #tpu.memory_space<vmem>>, %arg6: memref<1x128xf32, #tpu.memory_space<vmem>>, %arg7: memref<128x128xbf16, #tpu.memory_space<vmem>>, %arg8: memref<1x128xf32, #tpu.memory_space<vmem>>, %arg9: memref<128x32xbf16, #tpu.memory_space<vmem>>, %arg10: memref<1x32xf32, #tpu.memory_space<vmem>>, %arg11: memref<32x128xbf16, #tpu.memory_space<vmem>>, %arg12: memref<32x128xbf16, #tpu.memory_space<vmem>>, %arg13: memref<1x128xf32, #tpu.memory_space<vmem>>, %arg14: memref<1x256x128xf32, #tpu.memory_space<vmem>>) attributes {dimension_semantics = [#tpu.dimension_semantics<parallel>, #tpu.dimension_semantics<parallel>], iteration_bounds = array<i64: 2, 1>, scalar_prefetch = 0 : i64, scratch_operands = 0 : i64, tpu.core_type = #tpu.core_type<tc>, window_params = [{transform_indices = @transform_0, window_bounds = array<i64: 1, 256, 32>}, {transform_indices = @transform_1, window_bounds = array<i64: 1, 128, 128>}, {transform_indices = @transform_2, window_bounds = array<i64: 1, 128, 128>}, {pipeline_mode = #tpu.pipeline_mode<synchronous>, transform_indices = @transform_3, window_bounds = array<i64: 32, 128>}, {pipeline_mode = #tpu.pipeline_mode<synchronous>, transform_indices = @transform_4, window_bounds = array<i64: 1, 128>}, {pipeline_mode = #tpu.pipeline_mode<synchronous>, transform_indices = @transform_5, window_bounds = array<i64: 128, 128>}, {pipeline_mode = #tpu.pipeline_mode<synchronous>, transform_indices = @transform_6, window_bounds = array<i64: 1, 128>}, {pipeline_mode = #tpu.pipeline_mode<synchronous>, transform_indices = @transform_7, window_bounds = array<i64: 128, 32>}, {pipeline_mode = #tpu.pipeline_mode<synchronous>, transform_indices = @transform_8, window_bounds = array<i64: 1, 32>}, {pipeline_mode = #tpu.pipeline_mode<synchronous>, transform_indices = @transform_9, window_bounds = array<i64: 32, 128>}, {pipeline_mode = #tpu.pipeline_mode<synchronous>, transform_indices = @transform_10, window_bounds = array<i64: 32, 128>}, {pipeline_mode = #tpu.pipeline_mode<synchronous>, transform_indices = @transform_11, window_bounds = array<i64: 1, 128>}, {transform_indices = @transform_12, window_bounds = array<i64: 1, 256, 128>}]} {
    %c0 = arith.constant 0 : index
    %c0_0 = arith.constant 0 : index
    %c0_1 = arith.constant 0 : index
    %0 = vector.load %arg2[%c0, %c0_0, %c0_1] : memref<1x256x32xbf16, #tpu.memory_space<vmem>>, vector<1x256x32xbf16>
    %1 = vector.shape_cast %0 : vector<1x256x32xbf16> to vector<256x32xbf16>
    %c0_2 = arith.constant 0 : index
    %c0_3 = arith.constant 0 : index
    %c0_4 = arith.constant 0 : index
    %2 = vector.load %arg3[%c0_2, %c0_3, %c0_4] : memref<1x128x128xbf16, #tpu.memory_space<vmem>>, vector<1x128x128xbf16>
    %3 = vector.shape_cast %2 : vector<1x128x128xbf16> to vector<128x128xbf16>
    %c0_5 = arith.constant 0 : index
    %c0_6 = arith.constant 0 : index
    %c0_7 = arith.constant 0 : index
    %4 = vector.load %arg4[%c0_5, %c0_6, %c0_7] : memref<1x128x128xbf16, #tpu.memory_space<vmem>>, vector<1x128x128xbf16>
    %5 = vector.shape_cast %4 : vector<1x128x128xbf16> to vector<128x128xbf16>
    %c0_8 = arith.constant 0 : index
    %c0_9 = arith.constant 0 : index
    %6 = vector.load %arg5[%c0_8, %c0_9] : memref<32x128xbf16, #tpu.memory_space<vmem>>, vector<32x128xbf16>
    %cst = arith.constant dense<0.000000e+00> : vector<256x128xf32>
    %7 = tpu.matmul %1, %6, %cst {dimension_numbers = #tpu.dot_dimension_numbers<[1], [0], [0], [1], [0, 0, 1, 1], [], []>} : vector<256x32xbf16>, vector<32x128xbf16>, vector<256x128xf32> -> vector<256x128xf32>
    %c0_10 = arith.constant 0 : index
    %c0_11 = arith.constant 0 : index
    %8 = vector.load %arg6[%c0_10, %c0_11] : memref<1x128xf32, #tpu.memory_space<vmem>>, vector<1x128xf32>
    %9 = vector.broadcast %8 : vector<1x128xf32> to vector<256x128xf32>
    %10 = arith.addf %7, %9 : vector<256x128xf32>
    %cst_12 = arith.constant 0.000000e+00 : f32
    %11 = vector.broadcast %cst_12 : f32 to vector<256x128xf32>
    %12 = arith.maximumf %10, %11 : vector<256x128xf32>
    %13 = arith.truncf %12 : vector<256x128xf32> to vector<256x128xbf16>
    %c0_13 = arith.constant 0 : index
    %c0_14 = arith.constant 0 : index
    %14 = vector.load %arg7[%c0_13, %c0_14] : memref<128x128xbf16, #tpu.memory_space<vmem>>, vector<128x128xbf16>
    %cst_15 = arith.constant dense<0.000000e+00> : vector<256x128xf32>
    %15 = tpu.matmul %13, %14, %cst_15 {dimension_numbers = #tpu.dot_dimension_numbers<[1], [0], [0], [1], [0, 0, 1, 1], [], []>} : vector<256x128xbf16>, vector<128x128xbf16>, vector<256x128xf32> -> vector<256x128xf32>
    %c0_16 = arith.constant 0 : index
    %c0_17 = arith.constant 0 : index
    %16 = vector.load %arg8[%c0_16, %c0_17] : memref<1x128xf32, #tpu.memory_space<vmem>>, vector<1x128xf32>
    %17 = vector.broadcast %16 : vector<1x128xf32> to vector<256x128xf32>
    %18 = arith.addf %15, %17 : vector<256x128xf32>
    %cst_18 = arith.constant 0.000000e+00 : f32
    %19 = vector.broadcast %cst_18 : f32 to vector<256x128xf32>
    %20 = arith.maximumf %18, %19 : vector<256x128xf32>
    %21 = arith.truncf %20 : vector<256x128xf32> to vector<256x128xbf16>
    %cst_19 = arith.constant dense<0.000000e+00> : vector<256x128xf32>
    %22 = tpu.matmul %21, %3, %cst_19 {dimension_numbers = #tpu.dot_dimension_numbers<[1], [0], [0], [1], [0, 0, 1, 1], [], []>} : vector<256x128xbf16>, vector<128x128xbf16>, vector<256x128xf32> -> vector<256x128xf32>
    %cst_20 = arith.constant dense<0xFF800000> : vector<256xf32>
    %23 = vector.multi_reduction <maximumf>, %22, %cst_20 [1] : vector<256x128xf32> to vector<256xf32>
    %24 = vector.shape_cast %23 : vector<256xf32> to vector<256x1xf32>
    %25 = vector.broadcast %24 : vector<256x1xf32> to vector<256x128xf32>
    %26 = arith.subf %22, %25 : vector<256x128xf32>
    %27 = math.exp %26 : vector<256x128xf32>
    %28 = tpu.iota {dimensions = array<i32: 1>} : vector<256x128xi32>
    %c8_i32 = arith.constant 8 : i32
    %29 = vector.broadcast %c8_i32 : i32 to vector<256x128xi32>
    %30 = arith.cmpi slt, %28, %29 : vector<256x128xi32>
    %cst_21 = arith.constant 0.000000e+00 : f32
    %31 = vector.broadcast %cst_21 : f32 to vector<256x128xf32>
    %32 = arith.select %30, %27, %31 : vector<256x128xi1>, vector<256x128xf32>
    %cst_22 = arith.constant dense<0.000000e+00> : vector<256xf32>
    %33 = vector.multi_reduction <add>, %32, %cst_22 [1] : vector<256x128xf32> to vector<256xf32>
    %34 = vector.shape_cast %33 : vector<256xf32> to vector<256x1xf32>
    %35 = tpu.reciprocal %34 {approx = true} : vector<256x1xf32> -> vector<256x1xf32>
    %36 = vector.broadcast %35 : vector<256x1xf32> to vector<256x128xf32>
    %37 = arith.mulf %32, %36 : vector<256x128xf32>
    %38 = arith.truncf %37 : vector<256x128xf32> to vector<256x128xbf16>
    %cst_23 = arith.constant dense<0.000000e+00> : vector<256x128xf32>
    %39 = tpu.matmul %38, %5, %cst_23 {dimension_numbers = #tpu.dot_dimension_numbers<[1], [0], [0], [1], [0, 0, 1, 1], [], []>} : vector<256x128xbf16>, vector<128x128xbf16>, vector<256x128xf32> -> vector<256x128xf32>
    %40 = arith.truncf %39 : vector<256x128xf32> to vector<256x128xbf16>
    %c0_24 = arith.constant 0 : index
    %c0_25 = arith.constant 0 : index
    %41 = vector.load %arg9[%c0_24, %c0_25] : memref<128x32xbf16, #tpu.memory_space<vmem>>, vector<128x32xbf16>
    %cst_26 = arith.constant dense<0.000000e+00> : vector<256x32xf32>
    %42 = tpu.matmul %40, %41, %cst_26 {dimension_numbers = #tpu.dot_dimension_numbers<[1], [0], [0], [1], [0, 0, 1, 1], [], []>} : vector<256x128xbf16>, vector<128x32xbf16>, vector<256x32xf32> -> vector<256x32xf32>
    %c0_27 = arith.constant 0 : index
    %c0_28 = arith.constant 0 : index
    %43 = vector.load %arg10[%c0_27, %c0_28] : memref<1x32xf32, #tpu.memory_space<vmem>>, vector<1x32xf32>
    %44 = vector.broadcast %43 : vector<1x32xf32> to vector<256x32xf32>
    %45 = arith.addf %42, %44 : vector<256x32xf32>
    %cst_29 = arith.constant 0.000000e+00 : f32
    %46 = vector.broadcast %cst_29 : f32 to vector<256x32xf32>
    %47 = arith.maximumf %45, %46 : vector<256x32xf32>
    %48 = arith.truncf %47 : vector<256x32xf32> to vector<256x32xbf16>
    %c0_30 = arith.constant 0 : index
    %c0_31 = arith.constant 0 : index
    %49 = vector.load %arg11[%c0_30, %c0_31] : memref<32x128xbf16, #tpu.memory_space<vmem>>, vector<32x128xbf16>
    %cst_32 = arith.constant dense<0.000000e+00> : vector<256x128xf32>
    %50 = tpu.matmul %48, %49, %cst_32 {dimension_numbers = #tpu.dot_dimension_numbers<[1], [0], [0], [1], [0, 0, 1, 1], [], []>} : vector<256x32xbf16>, vector<32x128xbf16>, vector<256x128xf32> -> vector<256x128xf32>
    %c0_33 = arith.constant 0 : index
    %c0_34 = arith.constant 0 : index
    %51 = vector.load %arg12[%c0_33, %c0_34] : memref<32x128xbf16, #tpu.memory_space<vmem>>, vector<32x128xbf16>
    %cst_35 = arith.constant dense<0.000000e+00> : vector<256x128xf32>
    %52 = tpu.matmul %1, %51, %cst_35 {dimension_numbers = #tpu.dot_dimension_numbers<[1], [0], [0], [1], [0, 0, 1, 1], [], []>} : vector<256x32xbf16>, vector<32x128xbf16>, vector<256x128xf32> -> vector<256x128xf32>
    %53 = arith.addf %50, %52 : vector<256x128xf32>
    %c0_36 = arith.constant 0 : index
    %c0_37 = arith.constant 0 : index
    %54 = vector.load %arg13[%c0_36, %c0_37] : memref<1x128xf32, #tpu.memory_space<vmem>>, vector<1x128xf32>
    %55 = vector.broadcast %54 : vector<1x128xf32> to vector<256x128xf32>
    %56 = arith.addf %53, %55 : vector<256x128xf32>
    %cst_38 = arith.constant 0.000000e+00 : f32
    %57 = vector.broadcast %cst_38 : f32 to vector<256x128xf32>
    %58 = arith.maximumf %56, %57 : vector<256x128xf32>
    %c0_39 = arith.constant 0 : index
    %c0_40 = arith.constant 0 : index
    %c0_41 = arith.constant 0 : index
    %59 = vector.load %arg14[%c0_39, %c0_40, %c0_41] : memref<1x256x128xf32, #tpu.memory_space<vmem>>, vector<1x256x128xf32>
    %60 = vector.shape_cast %59 : vector<1x256x128xf32> to vector<256x128xf32>
    %61 = vector.shape_cast %58 : vector<256x128xf32> to vector<1x256x128xf32>
    tpu.vector_store %arg14[%c0_39, %c0_40, %c0_41], %61 {strides = array<i32>} : memref<1x256x128xf32, #tpu.memory_space<vmem>>, vector<1x256x128xf32>,
    return
  }
  func.func @transform_0(%arg0: i32, %arg1: i32) -> (i32, i32, i32) {
    %c0_i32 = arith.constant 0 : i32
    %c0_i32_0 = arith.constant 0 : i32
    return %arg0, %arg1, %c0_i32 : i32, i32, i32
  }
  func.func @transform_1(%arg0: i32, %arg1: i32) -> (i32, i32, i32) {
    %c0_i32 = arith.constant 0 : i32
    %c0_i32_0 = arith.constant 0 : i32
    %c0_i32_1 = arith.constant 0 : i32
    return %arg0, %c0_i32, %c0_i32_0 : i32, i32, i32
  }
  func.func @transform_2(%arg0: i32, %arg1: i32) -> (i32, i32, i32) {
    %c0_i32 = arith.constant 0 : i32
    %c0_i32_0 = arith.constant 0 : i32
    %c0_i32_1 = arith.constant 0 : i32
    return %arg0, %c0_i32, %c0_i32_0 : i32, i32, i32
  }
  func.func @transform_3(%arg0: i32, %arg1: i32) -> (i32, i32) {
    %c0_i32 = arith.constant 0 : i32
    %c0_i32_0 = arith.constant 0 : i32
    %c0_i32_1 = arith.constant 0 : i32
    return %c0_i32, %c0_i32_0 : i32, i32
  }
  func.func @transform_4(%arg0: i32, %arg1: i32) -> (i32, i32) {
    %c0_i32 = arith.constant 0 : i32
    %c0_i32_0 = arith.constant 0 : i32
    %c0_i32_1 = arith.constant 0 : i32
    return %c0_i32, %c0_i32_0 : i32, i32
  }
  func.func @transform_5(%arg0: i32, %arg1: i32) -> (i32, i32) {
    %c0_i32 = arith.constant 0 : i32
    %c0_i32_0 = arith.constant 0 : i32
    %c0_i32_1 = arith.constant 0 : i32
    return %c0_i32, %c0_i32_0 : i32, i32
  }
  func.func @transform_6(%arg0: i32, %arg1: i32) -> (i32, i32) {
    %c0_i32 = arith.constant 0 : i32
    %c0_i32_0 = arith.constant 0 : i32
    %c0_i32_1 = arith.constant 0 : i32
    return %c0_i32, %c0_i32_0 : i32, i32
  }
  func.func @transform_7(%arg0: i32, %arg1: i32) -> (i32, i32) {
    %c0_i32 = arith.constant 0 : i32
    %c0_i32_0 = arith.constant 0 : i32
    %c0_i32_1 = arith.constant 0 : i32
    return %c0_i32, %c0_i32_0 : i32, i32
  }
  func.func @transform_8(%arg0: i32, %arg1: i32) -> (i32, i32) {
    %c0_i32 = arith.constant 0 : i32
    %c0_i32_0 = arith.constant 0 : i32
    %c0_i32_1 = arith.constant 0 : i32
    return %c0_i32, %c0_i32_0 : i32, i32
  }
  func.func @transform_9(%arg0: i32, %arg1: i32) -> (i32, i32) {
    %c0_i32 = arith.constant 0 : i32
    %c0_i32_0 = arith.constant 0 : i32
    %c0_i32_1 = arith.constant 0 : i32
    return %c0_i32, %c0_i32_0 : i32, i32
  }
  func.func @transform_10(%arg0: i32, %arg1: i32) -> (i32, i32) {
    %c0_i32 = arith.constant 0 : i32
    %c0_i32_0 = arith.constant 0 : i32
    %c0_i32_1 = arith.constant 0 : i32
    return %c0_i32, %c0_i32_0 : i32, i32
  }
  func.func @transform_11(%arg0: i32, %arg1: i32) -> (i32, i32) {
    %c0_i32 = arith.constant 0 : i32
    %c0_i32_0 = arith.constant 0 : i32
    %c0_i32_1 = arith.constant 0 : i32
    return %c0_i32, %c0_i32_0 : i32, i32
  }
  func.func @transform_12(%arg0: i32, %arg1: i32) -> (i32, i32, i32) {
    %c0_i32 = arith.constant 0 : i32
    %c0_i32_0 = arith.constant 0 : i32
    return %arg0, %arg1, %c0_i32 : i32, i32, i32
  }
}

</mosaic_0001>

<llo_original>
// kernel: tpu_custom_call.1
$region0: #{tpu_custom_call.1}
  #allocation0 [shape = 'u32[]', space=smem, size = 0x4, offset = 0x4, fixed_abs, tag = 'smem constant byte address 0x4 - core index']
  #allocation1 [shape = 'u32[144,128]{1,0:T(1,128)}', space=vmem, size = 0x12000, scoped, tag = 'internal scratch']
  %s0 = inlined_call_operand.vmem [shape: bf16[2,256,32], index: 0, kind: input, shape index: {}]
  %s1 = inlined_call_operand.vmem [shape: bf16[2,128,128], index: 1, kind: input, shape index: {}]
  %s2 = inlined_call_operand.vmem [shape: bf16[2,128,128], index: 2, kind: input, shape index: {}]
  %s3 = inlined_call_operand.vmem [shape: bf16[32,128], index: 3, kind: input, shape index: {}]
  %s4 = inlined_call_operand.vmem [shape: f32[1,128], index: 4, kind: input, shape index: {}]
  %s5 = inlined_call_operand.vmem [shape: bf16[128,128], index: 5, kind: input, shape index: {}]
  %s6 = inlined_call_operand.vmem [shape: f32[1,128], index: 6, kind: input, shape index: {}]
  %s7 = inlined_call_operand.vmem [shape: bf16[128,32], index: 7, kind: input, shape index: {}]
  %s8 = inlined_call_operand.vmem [shape: f32[1,32], index: 8, kind: input, shape index: {}]
  %s9 = inlined_call_operand.vmem [shape: bf16[32,128], index: 9, kind: input, shape index: {}]
  %s10 = inlined_call_operand.vmem [shape: bf16[32,128], index: 10, kind: input, shape index: {}]
  %s11 = inlined_call_operand.vmem [shape: f32[1,128], index: 11, kind: input, shape index: {}]
  %s12 = inlined_call_operand.hbm [shape: f32[2,256,128], index: 12, kind: output, shape index: {}]
  %s13 = sld [smem:[#allocation0]]
  $region81: #{tpu_custom_call.1} parent=0
    _
  %s15 = ssub.s32 1, %s13
  %s16 = scalar_select 0, %s15, %s13
  $region1: #{tpu_custom_call.1} parent=0
    #allocation2 [shape = 'u8[262144]{0}', space=vmem, size = 0x40000, scoped, tag = 'output window, operand 0']
    #allocation3 [shape = 's32[2]{0}', space=sflag, size = 0x8, scoped, tag = 'scoped memory for tpu_custom_call.1']
    %17 = vsyncpa [#allocation3], 0
    %s18 = scalar_lea.sflag [#allocation3], 1
    %19 = vsyncpa %s18, 0
    loop: start=0, step=1, limit=4
    $region2: #{tpu_custom_call.1} parent=1 // loop_pre_header
      _
    $region3: #{tpu_custom_call.1} parent=1 // loop_header
      %s21 = sphi 0, %s25
      %p22 = scmp.ge.s32.totalorder %s21, 4
      %s28 = sphi 0, %s40
      %s29 = sphi 0, %s36
      %s30 = sphi 0, %s28
      %s31 = sphi 0, %s29
      %s32 = sphi 0, %s30
      %s33 = sphi 0, %s31
      %s45 = sphi 0, %s47
      %s48 = sphi 0, %s45
      %s49 = sphi 0, %s48
      %s65 = sphi 0, %s49
      %s71 = sphi 0, %s73
      %s74 = sphi 0, %s71
      %s75 = sphi 0, %s74
      %s91 = sphi 0, %s75
      %s97 = sphi 0, %s99
      %s100 = sphi 0, %s97
      %s101 = sphi 0, %s100
      %s117 = sphi 0, %s101
      %s121 = sphi 0, %s121
      %s123 = sphi 0, %s121
      %s124 = sphi 0, %s123
      %s138 = sphi 0, %s124
      %s142 = sphi 0, %s142
      %s144 = sphi 0, %s142
      %s145 = sphi 0, %s144
      %s159 = sphi 0, %s145
      %s163 = sphi 0, %s163
      %s165 = sphi 0, %s163
      %s166 = sphi 0, %s165
      %s180 = sphi 0, %s166
      %s184 = sphi 0, %s184
      %s186 = sphi 0, %s184
      %s187 = sphi 0, %s186
      %s201 = sphi 0, %s187
      %s205 = sphi 0, %s205
      %s207 = sphi 0, %s205
      %s208 = sphi 0, %s207
      %s222 = sphi 0, %s208
      %s226 = sphi 0, %s226
      %s228 = sphi 0, %s226
      %s229 = sphi 0, %s228
      %s243 = sphi 0, %s229
      %s247 = sphi 0, %s247
      %s249 = sphi 0, %s247
      %s250 = sphi 0, %s249
      %s264 = sphi 0, %s250
      %s268 = sphi 0, %s268
      %s270 = sphi 0, %s268
      %s271 = sphi 0, %s270
      %s285 = sphi 0, %s271
      %s289 = sphi 0, %s289
      %s291 = sphi 0, %s289
      %s292 = sphi 0, %s291
      %s306 = sphi 0, %s292
      %s314 = sphi 0, %s316
      %s317 = sphi 0, %s314
      %s318 = sphi 0, %s317
      %s334 = sphi 0, %s318
    $region4: #{tpu_custom_call.1} parent=1 // loop_header_branch
      %24 = sbr.rel (%p22) target = $region8
    $region5: #{tpu_custom_call.1} parent=1 // loop_body
      %s26 = ssub.s32 %s21, 1
      %s27 = ssub.s32 %s21, 2
      %s34 = sadd.s32 1, %s29
      %p35 = scmp.ge.s32.totalorder %s34, 1
      %s36 = scalar_select %p35, 0, %s34
      %s37 = sadd.s32 1, %s28
      %s38 = scalar_select %p35, %s37, %s28
      %p39 = scmp.ge.s32.totalorder %s38, 2
      %s40 = scalar_select %p39, 0, %s38
      %s41 = ssub.s32 %s28, %s40
      %s42 = ssub.s32 %s29, %s36
      %s43 = sor.u32 %s41, %s42
      %p44 = scmp.eq.s32.totalorder %s43, 0
      %s46 = sadd.s32 %s45, 1
      %s47 = scalar_select %p44, %s45, %s46
      %p50 = pneg %p44
      %p51 = scmp.eq.s32.totalorder %s21, 1
      %p52 = por %p50, %p51
      %p53 = scmp.ne.s32.totalorder %s45, %s48
      %p54 = scmp.eq.s32.totalorder %s21, 0
      %p55 = por %p53, %p54
      %p56 = scmp.ne.s32.totalorder %s45, %s48
      %p57 = scmp.eq.s32.totalorder %s26, 1
      %p58 = por %p56, %p57
      %p59 = scmp.ne.s32.totalorder %s48, %s49
      %p60 = scmp.eq.s32.totalorder %s26, 0
      %p61 = por %p59, %p60
      %p62 = scmp.ne.s32.totalorder %s48, %s49
      %p63 = scmp.eq.s32.totalorder %s27, 1
      %p64 = por %p62, %p63
      %p66 = scmp.ne.s32.totalorder %s49, %s65
      %p67 = scmp.eq.s32.totalorder %s27, 0
      %p68 = por %p66, %p67
      %s69 = ssub.s32 %s28, %s40
      %p70 = scmp.eq.s32.totalorder %s69, 0
      %s72 = sadd.s32 %s71, 1
      %s73 = scalar_select %p70, %s71, %s72
      %p76 = pneg %p70
      %p77 = scmp.eq.s32.totalorder %s21, 1
      %p78 = por %p76, %p77
      %p79 = scmp.ne.s32.totalorder %s71, %s74
      %p80 = scmp.eq.s32.totalorder %s21, 0
      %p81 = por %p79, %p80
      %p82 = scmp.ne.s32.totalorder %s71, %s74
      %p83 = scmp.eq.s32.totalorder %s26, 1
      %p84 = por %p82, %p83
      %p85 = scmp.ne.s32.totalorder %s74, %s75
      %p86 = scmp.eq.s32.totalorder %s26, 0
      %p87 = por %p85, %p86
      %p88 = scmp.ne.s32.totalorder %s74, %s75
      %p89 = scmp.eq.s32.totalorder %s27, 1
      %p90 = por %p88, %p89
      %p92 = scmp.ne.s32.totalorder %s75, %s91
      %p93 = scmp.eq.s32.totalorder %s27, 0
      %p94 = por %p92, %p93
      %s95 = ssub.s32 %s28, %s40
      %p96 = scmp.eq.s32.totalorder %s95, 0
      %s98 = sadd.s32 %s97, 1
      %s99 = scalar_select %p96, %s97, %s98
      %p102 = pneg %p96
      %p103 = scmp.eq.s32.totalorder %s21, 1
      %p104 = por %p102, %p103
      %p105 = scmp.ne.s32.totalorder %s97, %s100
      %p106 = scmp.eq.s32.totalorder %s21, 0
      %p107 = por %p105, %p106
      %p108 = scmp.ne.s32.totalorder %s97, %s100
      %p109 = scmp.eq.s32.totalorder %s26, 1
      %p110 = por %p108, %p109
      %p111 = scmp.ne.s32.totalorder %s100, %s101
      %p112 = scmp.eq.s32.totalorder %s26, 0
      %p113 = por %p111, %p112
      %p114 = scmp.ne.s32.totalorder %s100, %s101
      %p115 = scmp.eq.s32.totalorder %s27, 1
      %p116 = por %p114, %p115
      %p118 = scmp.ne.s32.totalorder %s101, %s117
      %p119 = scmp.eq.s32.totalorder %s27, 0
      %p120 = por %p118, %p119
      %s122 = sadd.s32 %s121, 1
      %p125 = scmp.eq.s32.totalorder %s21, 1
      %p126 = scmp.ne.s32.totalorder %s121, %s123
      %p127 = scmp.eq.s32.totalorder %s21, 0
      %p128 = por %p126, %p127
      %p129 = scmp.ne.s32.totalorder %s121, %s123
      %p130 = scmp.eq.s32.totalorder %s26, 1
      %p131 = por %p129, %p130
      %p132 = scmp.ne.s32.totalorder %s123, %s124
      %p133 = scmp.eq.s32.totalorder %s26, 0
      %p134 = por %p132, %p133
      %p135 = scmp.ne.s32.totalorder %s123, %s124
      %p136 = scmp.eq.s32.totalorder %s27, 1
      %p137 = por %p135, %p136
      %p139 = scmp.ne.s32.totalorder %s124, %s138
      %p140 = scmp.eq.s32.totalorder %s27, 0
      %p141 = por %p139, %p140
      %s143 = sadd.s32 %s142, 1
      %p146 = scmp.eq.s32.totalorder %s21, 1
      %p147 = scmp.ne.s32.totalorder %s142, %s144
      %p148 = scmp.eq.s32.totalorder %s21, 0
      %p149 = por %p147, %p148
      %p150 = scmp.ne.s32.totalorder %s142, %s144
      %p151 = scmp.eq.s32.totalorder %s26, 1
      %p152 = por %p150, %p151
      %p153 = scmp.ne.s32.totalorder %s144, %s145
      %p154 = scmp.eq.s32.totalorder %s26, 0
      %p155 = por %p153, %p154
      %p156 = scmp.ne.s32.totalorder %s144, %s145
      %p157 = scmp.eq.s32.totalorder %s27, 1
      %p158 = por %p156, %p157
      %p160 = scmp.ne.s32.totalorder %s145, %s159
      %p161 = scmp.eq.s32.totalorder %s27, 0
      %p162 = por %p160, %p161
      %s164 = sadd.s32 %s163, 1
      %p167 = scmp.eq.s32.totalorder %s21, 1
      %p168 = scmp.ne.s32.totalorder %s163, %s165
      %p169 = scmp.eq.s32.totalorder %s21, 0
      %p170 = por %p168, %p169
      %p171 = scmp.ne.s32.totalorder %s163, %s165
      %p172 = scmp.eq.s32.totalorder %s26, 1
      %p173 = por %p171, %p172
      %p174 = scmp.ne.s32.totalorder %s165, %s166
      %p175 = scmp.eq.s32.totalorder %s26, 0
      %p176 = por %p174, %p175
      %p177 = scmp.ne.s32.totalorder %s165, %s166
      %p178 = scmp.eq.s32.totalorder %s27, 1
      %p179 = por %p177, %p178
      %p181 = scmp.ne.s32.totalorder %s166, %s180
      %p182 = scmp.eq.s32.totalorder %s27, 0
      %p183 = por %p181, %p182
      %s185 = sadd.s32 %s184, 1
      %p188 = scmp.eq.s32.totalorder %s21, 1
      %p189 = scmp.ne.s32.totalorder %s184, %s186
      %p190 = scmp.eq.s32.totalorder %s21, 0
      %p191 = por %p189, %p190
      %p192 = scmp.ne.s32.totalorder %s184, %s186
      %p193 = scmp.eq.s32.totalorder %s26, 1
      %p194 = por %p192, %p193
      %p195 = scmp.ne.s32.totalorder %s186, %s187
      %p196 = scmp.eq.s32.totalorder %s26, 0
      %p197 = por %p195, %p196
      %p198 = scmp.ne.s32.totalorder %s186, %s187
      %p199 = scmp.eq.s32.totalorder %s27, 1
      %p200 = por %p198, %p199
      %p202 = scmp.ne.s32.totalorder %s187, %s201
      %p203 = scmp.eq.s32.totalorder %s27, 0
      %p204 = por %p202, %p203
      %s206 = sadd.s32 %s205, 1
      %p209 = scmp.eq.s32.totalorder %s21, 1
      %p210 = scmp.ne.s32.totalorder %s205, %s207
      %p211 = scmp.eq.s32.totalorder %s21, 0
      %p212 = por %p210, %p211
      %p213 = scmp.ne.s32.totalorder %s205, %s207
      %p214 = scmp.eq.s32.totalorder %s26, 1
      %p215 = por %p213, %p214
      %p216 = scmp.ne.s32.totalorder %s207, %s208
      %p217 = scmp.eq.s32.totalorder %s26, 0
      %p218 = por %p216, %p217
      %p219 = scmp.ne.s32.totalorder %s207, %s208
      %p220 = scmp.eq.s32.totalorder %s27, 1
      %p221 = por %p219, %p220
      %p223 = scmp.ne.s32.totalorder %s208, %s222
      %p224 = scmp.eq.s32.totalorder %s27, 0
      %p225 = por %p223, %p224
      %s227 = sadd.s32 %s226, 1
      %p230 = scmp.eq.s32.totalorder %s21, 1
      %p231 = scmp.ne.s32.totalorder %s226, %s228
      %p232 = scmp.eq.s32.totalorder %s21, 0
      %p233 = por %p231, %p232
      %p234 = scmp.ne.s32.totalorder %s226, %s228
      %p235 = scmp.eq.s32.totalorder %s26, 1
      %p236 = por %p234, %p235
      %p237 = scmp.ne.s32.totalorder %s228, %s229
      %p238 = scmp.eq.s32.totalorder %s26, 0
      %p239 = por %p237, %p238
      %p240 = scmp.ne.s32.totalorder %s228, %s229
      %p241 = scmp.eq.s32.totalorder %s27, 1
      %p242 = por %p240, %p241
      %p244 = scmp.ne.s32.totalorder %s229, %s243
      %p245 = scmp.eq.s32.totalorder %s27, 0
      %p246 = por %p244, %p245
      %s248 = sadd.s32 %s247, 1
      %p251 = scmp.eq.s32.totalorder %s21, 1
      %p252 = scmp.ne.s32.totalorder %s247, %s249
      %p253 = scmp.eq.s32.totalorder %s21, 0
      %p254 = por %p252, %p253
      %p255 = scmp.ne.s32.totalorder %s247, %s249
      %p256 = scmp.eq.s32.totalorder %s26, 1
      %p257 = por %p255, %p256
      %p258 = scmp.ne.s32.totalorder %s249, %s250
      %p259 = scmp.eq.s32.totalorder %s26, 0
      %p260 = por %p258, %p259
      %p261 = scmp.ne.s32.totalorder %s249, %s250
      %p262 = scmp.eq.s32.totalorder %s27, 1
      %p263 = por %p261, %p262
      %p265 = scmp.ne.s32.totalorder %s250, %s264
      %p266 = scmp.eq.s32.totalorder %s27, 0
      %p267 = por %p265, %p266
      %s269 = sadd.s32 %s268, 1
      %p272 = scmp.eq.s32.totalorder %s21, 1
      %p273 = scmp.ne.s32.totalorder %s268, %s270
      %p274 = scmp.eq.s32.totalorder %s21, 0
      %p275 = por %p273, %p274
      %p276 = scmp.ne.s32.totalorder %s268, %s270
      %p277 = scmp.eq.s32.totalorder %s26, 1
      %p278 = por %p276, %p277
      %p279 = scmp.ne.s32.totalorder %s270, %s271
      %p280 = scmp.eq.s32.totalorder %s26, 0
      %p281 = por %p279, %p280
      %p282 = scmp.ne.s32.totalorder %s270, %s271
      %p283 = scmp.eq.s32.totalorder %s27, 1
      %p284 = por %p282, %p283
      %p286 = scmp.ne.s32.totalorder %s271, %s285
      %p287 = scmp.eq.s32.totalorder %s27, 0
      %p288 = por %p286, %p287
      %s290 = sadd.s32 %s289, 1
      %p293 = scmp.eq.s32.totalorder %s21, 1
      %p294 = scmp.ne.s32.totalorder %s289, %s291
      %p295 = scmp.eq.s32.totalorder %s21, 0
      %p296 = por %p294, %p295
      %p297 = scmp.ne.s32.totalorder %s289, %s291
      %p298 = scmp.eq.s32.totalorder %s26, 1
      %p299 = por %p297, %p298
      %p300 = scmp.ne.s32.totalorder %s291, %s292
      %p301 = scmp.eq.s32.totalorder %s26, 0
      %p302 = por %p300, %p301
      %p303 = scmp.ne.s32.totalorder %s291, %s292
      %p304 = scmp.eq.s32.totalorder %s27, 1
      %p305 = por %p303, %p304
      %p307 = scmp.ne.s32.totalorder %s292, %s306
      %p308 = scmp.eq.s32.totalorder %s27, 0
      %p309 = por %p307, %p308
      %s310 = ssub.s32 %s28, %s40
      %s311 = ssub.s32 %s29, %s36
      %s312 = sor.u32 %s310, %s311
      %p313 = scmp.eq.s32.totalorder %s312, 0
      %s315 = sadd.s32 %s314, 1
      %s316 = scalar_select %p313, %s314, %s315
      %p319 = pneg %p313
      %p320 = scmp.eq.s32.totalorder %s21, 1
      %p321 = por %p319, %p320
      %p322 = scmp.ne.s32.totalorder %s314, %s317
      %p323 = scmp.eq.s32.totalorder %s21, 0
      %p324 = por %p322, %p323
      %p325 = scmp.ne.s32.totalorder %s314, %s317
      %p326 = scmp.eq.s32.totalorder %s26, 1
      %p327 = por %p325, %p326
      %p328 = scmp.ne.s32.totalorder %s317, %s318
      %p329 = scmp.eq.s32.totalorder %s26, 0
      %p330 = por %p328, %p329
      %p331 = scmp.ne.s32.totalorder %s317, %s318
      %p332 = scmp.eq.s32.totalorder %s27, 1
      %p333 = por %p331, %p332
      %p335 = scmp.ne.s32.totalorder %s318, %s334
      %p336 = scmp.eq.s32.totalorder %s27, 0
      %p337 = por %p335, %p336
      %p338 = scmp.le.s32.totalorder 1, %s21
      %p339 = scmp.lt.s32.totalorder %s21, 3
      %p340 = pnand %p338, %p339
      %p341 = pneg %p340
      // Predicated region
      $region9: #{tpu_custom_call.1} parent=5 // pred_check
        _
      $region10: #{tpu_custom_call.1} parent=5 // pred_check_branch
        %343 = sbr.rel (%p340) target = $region12
      $region11: #{tpu_custom_call.1} parent=5 // pred_region
        %s344 = ssub.s32 %s21, 1
        // Predicated region
        $region13: #{tpu_custom_call.1} parent=11 // pred_check
          %p345 = pneg %p134
        $region14: #{tpu_custom_call.1} parent=11 // pred_check_branch
          %347 = sbr.rel (%p345) target = $region16
        $region15: #{tpu_custom_call.1} parent=11 // pred_region
          _
        $region16: #{tpu_custom_call.1} parent=11 // pred_fallthru
          _
        // Predicated region
        $region17: #{tpu_custom_call.1} parent=11 // pred_check
          %p348 = pneg %p155
        $region18: #{tpu_custom_call.1} parent=11 // pred_check_branch
          %350 = sbr.rel (%p348) target = $region20
        $region19: #{tpu_custom_call.1} parent=11 // pred_region
          _
        $region20: #{tpu_custom_call.1} parent=11 // pred_fallthru
          _
        // Predicated region
        $region21: #{tpu_custom_call.1} parent=11 // pred_check
          %p351 = pneg %p176
        $region22: #{tpu_custom_call.1} parent=11 // pred_check_branch
          %353 = sbr.rel (%p351) target = $region24
        $region23: #{tpu_custom_call.1} parent=11 // pred_region
          _
        $region24: #{tpu_custom_call.1} parent=11 // pred_fallthru
          _
        // Predicated region
        $region25: #{tpu_custom_call.1} parent=11 // pred_check
          %p354 = pneg %p197
        $region26: #{tpu_custom_call.1} parent=11 // pred_check_branch
          %356 = sbr.rel (%p354) target = $region28
        $region27: #{tpu_custom_call.1} parent=11 // pred_region
          _
        $region28: #{tpu_custom_call.1} parent=11 // pred_fallthru
          _
        // Predicated region
        $region29: #{tpu_custom_call.1} parent=11 // pred_check
          %p357 = pneg %p218
        $region30: #{tpu_custom_call.1} parent=11 // pred_check_branch
          %359 = sbr.rel (%p357) target = $region32
        $region31: #{tpu_custom_call.1} parent=11 // pred_region
          _
        $region32: #{tpu_custom_call.1} parent=11 // pred_fallthru
          _
        // Predicated region
        $region33: #{tpu_custom_call.1} parent=11 // pred_check
          %p360 = pneg %p239
        $region34: #{tpu_custom_call.1} parent=11 // pred_check_branch
          %362 = sbr.rel (%p360) target = $region36
        $region35: #{tpu_custom_call.1} parent=11 // pred_region
          _
        $region36: #{tpu_custom_call.1} parent=11 // pred_fallthru
          _
        // Predicated region
        $region37: #{tpu_custom_call.1} parent=11 // pred_check
          %p363 = pneg %p260
        $region38: #{tpu_custom_call.1} parent=11 // pred_check_branch
          %365 = sbr.rel (%p363) target = $region40
        $region39: #{tpu_custom_call.1} parent=11 // pred_region
          _
        $region40: #{tpu_custom_call.1} parent=11 // pred_fallthru
          _
        // Predicated region
        $region41: #{tpu_custom_call.1} parent=11 // pred_check
          %p366 = pneg %p281
        $region42: #{tpu_custom_call.1} parent=11 // pred_check_branch
          %368 = sbr.rel (%p366) target = $region44
        $region43: #{tpu_custom_call.1} parent=11 // pred_region
          _
        $region44: #{tpu_custom_call.1} parent=11 // pred_fallthru
          _
        // Predicated region
        $region45: #{tpu_custom_call.1} parent=11 // pred_check
          %p369 = pneg %p302
        $region46: #{tpu_custom_call.1} parent=11 // pred_check_branch
          %371 = sbr.rel (%p369) target = $region48
        $region47: #{tpu_custom_call.1} parent=11 // pred_region
          _
        $region48: #{tpu_custom_call.1} parent=11 // pred_fallthru
          _
      $region12: #{tpu_custom_call.1} parent=5 // pred_fallthru
        _
      %p372 = scmp.lt.s32.totalorder %s21, 2
      // Predicated region
      $region49: #{tpu_custom_call.1} parent=5 // pred_check
        %p373 = pneg %p372
      $region50: #{tpu_custom_call.1} parent=5 // pred_check_branch
        %375 = sbr.rel (%p373) target = $region52
      $region51: #{tpu_custom_call.1} parent=5 // pred_region
        // Predicated region
        $region53: #{tpu_custom_call.1} parent=51 // pred_check
          %p376 = pneg %p55
        $region54: #{tpu_custom_call.1} parent=51 // pred_check_branch
          %378 = sbr.rel (%p376) target = $region56
        $region55: #{tpu_custom_call.1} parent=51 // pred_region
          %s379 = smul.u32 32, %s29
          %p380 = scmp.lt.s32.totalorder %s28, 1
          %s381 = scalar_select %p380, %s28, 1
          %p382 = scmp.lt.s32.totalorder %s379, 31
          %s383 = scalar_select %p382, %s379, 31
          %s384 = smul.addr %s381, 32
          %s385 = sadd.s32 %s383, %s384
          %s386 = smul.addr %s385, 4
          %s387 = scalar_lea.vmem %s0, %s386
          %s388 = smul.u32 32, %s29
        $region56: #{tpu_custom_call.1} parent=51 // pred_fallthru
          _
        // Predicated region
        $region57: #{tpu_custom_call.1} parent=51 // pred_check
          %p389 = pneg %p81
        $region58: #{tpu_custom_call.1} parent=51 // pred_check_branch
          %391 = sbr.rel (%p389) target = $region60
        $region59: #{tpu_custom_call.1} parent=51 // pred_region
          %p392 = scmp.lt.s32.totalorder %s28, 1
          %s393 = scalar_select %p392, %s28, 1
          %s394 = smul.addr %s393, 16
          %s395 = smul.addr %s394, 4
          %s396 = scalar_lea.vmem %s1, %s395
        $region60: #{tpu_custom_call.1} parent=51 // pred_fallthru
          _
        // Predicated region
        $region61: #{tpu_custom_call.1} parent=51 // pred_check
          %p397 = pneg %p107
        $region62: #{tpu_custom_call.1} parent=51 // pred_check_branch
          %399 = sbr.rel (%p397) target = $region64
        $region63: #{tpu_custom_call.1} parent=51 // pred_region
          %p400 = scmp.lt.s32.totalorder %s28, 1
          %s401 = scalar_select %p400, %s28, 1
          %s402 = smul.addr %s401, 16
          %s403 = smul.addr %s402, 4
          %s404 = scalar_lea.vmem %s2, %s403
        $region64: #{tpu_custom_call.1} parent=51 // pred_fallthru
          _
      $region52: #{tpu_custom_call.1} parent=5 // pred_fallthru
        _
      %p405 = scmp.le.s32.totalorder 1, %s21
      %p406 = scmp.lt.s32.totalorder %s21, 3
      %p407 = pnand %p405, %p406
      %p408 = pneg %p407
      // Predicated region
      $region65: #{tpu_custom_call.1} parent=5 // pred_check
        _
      $region66: #{tpu_custom_call.1} parent=5 // pred_check_branch
        %410 = sbr.rel (%p407) target = $region68
      $region67: #{tpu_custom_call.1} parent=5 // pred_region
        %s411 = ssub.s32 %s21, 1
        %s412 = smul.u32 32, %s31
        %p413 = scmp.lt.s32.totalorder %s30, 1
        %s414 = scalar_select %p413, %s30, 1
        %p415 = scmp.lt.s32.totalorder %s412, 31
        %s416 = scalar_select %p415, %s412, 31
        %s417 = smul.addr %s414, 32
        %s418 = sadd.s32 %s416, %s417
        %s419 = smul.addr %s418, 4
        %s420 = scalar_lea.vmem %s0, %s419
        %p421 = pneg %p61
        %p422 = pneg %p58
        %p423 = scmp.lt.s32.totalorder %s30, 1
        %s424 = scalar_select %p423, %s30, 1
        %s425 = smul.addr %s424, 16
        %s426 = smul.addr %s425, 4
        %s427 = scalar_lea.vmem %s1, %s426
        %p428 = pneg %p87
        %p429 = pneg %p84
        %p430 = scmp.lt.s32.totalorder %s30, 1
        %s431 = scalar_select %p430, %s30, 1
        %s432 = smul.addr %s431, 16
        %s433 = smul.addr %s432, 4
        %s434 = scalar_lea.vmem %s2, %s433
        %p435 = pneg %p113
        %p436 = pneg %p110
        %p437 = pneg %p134
        %p438 = pneg %p131
        %p439 = pneg %p155
        %p440 = pneg %p152
        %p441 = pneg %p176
        %p442 = pneg %p173
        %p443 = pneg %p197
        %p444 = pneg %p194
        %p445 = pneg %p218
        %p446 = pneg %p215
        %p447 = pneg %p239
        %p448 = pneg %p236
        %p449 = pneg %p260
        %p450 = pneg %p257
        %p451 = pneg %p281
        %p452 = pneg %p278
        %p453 = pneg %p302
        %p454 = pneg %p299
        %p455 = pneg %p330
        %p456 = pneg %p327
        %s457 = sand.u32 %s317, 1
        %s458 = scalar_lea.sflag [#allocation3], %s457
        %s459 = sand.u32 %s317, 1
        %s460 = smul.addr %s459, 256
        %s461 = scalar_lea.vmem [#allocation2], %s460
        %s462 = smul.u32 32, %s31
        %p463 = scmp.lt.s32.totalorder %s30, 1
        %s464 = scalar_select %p463, %s30, 1
        %p465 = scmp.lt.s32.totalorder %s462, 31
        %s466 = scalar_select %p465, %s462, 31
        %s467 = smul.addr %s464, 32
        %s468 = sadd.s32 %s466, %s467
        %s469 = smul.addr %s468, 4
        %s470 = scalar_lea.vmem %s0, %s469
        %s471 = smul.u32 32, %s31
        %p472 = scmp.lt.s32.totalorder %s30, 1
        %s473 = scalar_select %p472, %s30, 1
        %s474 = smul.addr %s473, 16
        %s475 = smul.addr %s474, 4
        %s476 = scalar_lea.vmem %s1, %s475
        %p477 = scmp.lt.s32.totalorder %s30, 1
        %s478 = scalar_select %p477, %s30, 1
        %s479 = smul.addr %s478, 16
        %s480 = smul.addr %s479, 4
        %s481 = scalar_lea.vmem %s2, %s480
        %s482 = smul.u32 32, %s31
        %v484 = vld [vmem:[%s470] sm:$0xf]
        %v485 = vld [vmem:[%s470 + $0x4] sm:$0xf]
        %v486 = vld [vmem:[%s470 + $0x8] sm:$0xf]
        %v487 = vld [vmem:[%s470 + $0xc] sm:$0xf]
        %v488 = vld [vmem:[%s470 + $0x10] sm:$0xf]
        %v489 = vld [vmem:[%s470 + $0x14] sm:$0xf]
        %v490 = vld [vmem:[%s470 + $0x18] sm:$0xf]
        %v491 = vld [vmem:[%s470 + $0x1c] sm:$0xf]
        %v492 = vld [vmem:[%s470 + $0x20] sm:$0xf]
        %v493 = vld [vmem:[%s470 + $0x24] sm:$0xf]
        %v494 = vld [vmem:[%s470 + $0x28] sm:$0xf]
        %v495 = vld [vmem:[%s470 + $0x2c] sm:$0xf]
        %v496 = vld [vmem:[%s470 + $0x30] sm:$0xf]
        %v497 = vld [vmem:[%s470 + $0x34] sm:$0xf]
        %v498 = vld [vmem:[%s470 + $0x38] sm:$0xf]
        %v499 = vld [vmem:[%s470 + $0x3c] sm:$0xf]
        %v500 = vld [vmem:[%s470 + $0x40] sm:$0xf]
        %v501 = vld [vmem:[%s470 + $0x44] sm:$0xf]
        %v502 = vld [vmem:[%s470 + $0x48] sm:$0xf]
        %v503 = vld [vmem:[%s470 + $0x4c] sm:$0xf]
        %v504 = vld [vmem:[%s470 + $0x50] sm:$0xf]
        %v505 = vld [vmem:[%s470 + $0x54] sm:$0xf]
        %v506 = vld [vmem:[%s470 + $0x58] sm:$0xf]
        %v507 = vld [vmem:[%s470 + $0x5c] sm:$0xf]
        %v508 = vld [vmem:[%s470 + $0x60] sm:$0xf]
        %v509 = vld [vmem:[%s470 + $0x64] sm:$0xf]
        %v510 = vld [vmem:[%s470 + $0x68] sm:$0xf]
        %v511 = vld [vmem:[%s470 + $0x6c] sm:$0xf]
        %v512 = vld [vmem:[%s470 + $0x70] sm:$0xf]
        %v513 = vld [vmem:[%s470 + $0x74] sm:$0xf]
        %v514 = vld [vmem:[%s470 + $0x78] sm:$0xf]
        %v515 = vld [vmem:[%s470 + $0x7c] sm:$0xf]
        %v516 = vld [vmem:[%s476] sm:$0xf]
        %v517 = vld [vmem:[%s476 + $0x4] sm:$0xf]
        %v518 = vld [vmem:[%s476 + $0x8] sm:$0xf]
        %v519 = vld [vmem:[%s476 + $0xc] sm:$0xf]
        %v520 = vld [vmem:[%s476 + $0x10] sm:$0xf]
        %v521 = vld [vmem:[%s476 + $0x14] sm:$0xf]
        %v522 = vld [vmem:[%s476 + $0x18] sm:$0xf]
        %v523 = vld [vmem:[%s476 + $0x1c] sm:$0xf]
        %v524 = vld [vmem:[%s476 + $0x20] sm:$0xf]
        %v525 = vld [vmem:[%s476 + $0x24] sm:$0xf]
        %v526 = vld [vmem:[%s476 + $0x28] sm:$0xf]
        %v527 = vld [vmem:[%s476 + $0x2c] sm:$0xf]
        %v528 = vld [vmem:[%s476 + $0x30] sm:$0xf]
        %v529 = vld [vmem:[%s476 + $0x34] sm:$0xf]
        %v530 = vld [vmem:[%s476 + $0x38] sm:$0xf]
        %v531 = vld [vmem:[%s476 + $0x3c] sm:$0xf]
        %v532 = vld [vmem:[%s481] sm:$0xf]
        %v533 = vld [vmem:[%s481 + $0x4] sm:$0xf]
        %v534 = vld [vmem:[%s481 + $0x8] sm:$0xf]
        %v535 = vld [vmem:[%s481 + $0xc] sm:$0xf]
        %v536 = vld [vmem:[%s481 + $0x10] sm:$0xf]
        %v537 = vld [vmem:[%s481 + $0x14] sm:$0xf]
        %v538 = vld [vmem:[%s481 + $0x18] sm:$0xf]
        %v539 = vld [vmem:[%s481 + $0x1c] sm:$0xf]
        %v540 = vld [vmem:[%s481 + $0x20] sm:$0xf]
        %v541 = vld [vmem:[%s481 + $0x24] sm:$0xf]
        %v542 = vld [vmem:[%s481 + $0x28] sm:$0xf]
        %v543 = vld [vmem:[%s481 + $0x2c] sm:$0xf]
        %v544 = vld [vmem:[%s481 + $0x30] sm:$0xf]
        %v545 = vld [vmem:[%s481 + $0x34] sm:$0xf]
        %v546 = vld [vmem:[%s481 + $0x38] sm:$0xf]
        %v547 = vld [vmem:[%s481 + $0x3c] sm:$0xf]
        %v548 = vld [vmem:[%s3] sm:$0xf]
        %v549 = vld [vmem:[%s3 + $0x4] sm:$0xf]
        %v550 = vld [vmem:[%s3 + $0x8] sm:$0xf]
        %v551 = vld [vmem:[%s3 + $0xc] sm:$0xf]
        %v552 = vld [vmem:[%s4] sm:$0x1]
        %v554 = vlaneseq
        %v555 = vshrl.u32 %v554, 7
        %v556 = vsub.s32 0, %v555
        %v557 = vrot.slane %v552, %v556
        %v591 = vunpack.c.l.b16 %v484
        %v592 = vunpack.c.l.b16 %v485
        %v593 = vunpack.c.l.b16 %v486
        %v594 = vunpack.c.l.b16 %v487
        %v595 = vunpack.c.l.b16 %v488
        %v596 = vunpack.c.l.b16 %v489
        %v597 = vunpack.c.l.b16 %v490
        %v598 = vunpack.c.l.b16 %v491
        %v599 = vunpack.c.l.b16 %v492
        %v600 = vunpack.c.l.b16 %v493
        %v601 = vunpack.c.l.b16 %v494
        %v602 = vunpack.c.l.b16 %v495
        %v603 = vunpack.c.l.b16 %v496
        %v604 = vunpack.c.l.b16 %v497
        %v605 = vunpack.c.l.b16 %v498
        %v606 = vunpack.c.l.b16 %v499
        %v607 = vunpack.c.l.b16 %v500
        %v608 = vunpack.c.l.b16 %v501
        %v609 = vunpack.c.l.b16 %v502
        %v610 = vunpack.c.l.b16 %v503
        %v611 = vunpack.c.l.b16 %v504
        %v612 = vunpack.c.l.b16 %v505
        %v613 = vunpack.c.l.b16 %v506
        %v614 = vunpack.c.l.b16 %v507
        %v615 = vunpack.c.l.b16 %v508
        %v616 = vunpack.c.l.b16 %v509
        %v617 = vunpack.c.l.b16 %v510
        %v618 = vunpack.c.l.b16 %v511
        %v619 = vunpack.c.l.b16 %v512
        %v620 = vunpack.c.l.b16 %v513
        %v621 = vunpack.c.l.b16 %v514
        %v622 = vunpack.c.l.b16 %v515
        %v623 = vpack.c.b16 %v592, %v591
        %v624 = vpack.c.b16 %v594, %v593
        %v625 = vpack.c.b16 %v596, %v595
        %v626 = vpack.c.b16 %v598, %v597
        %v627 = vpack.c.b16 %v600, %v599
        %v628 = vpack.c.b16 %v602, %v601
        %v629 = vpack.c.b16 %v604, %v603
        %v630 = vpack.c.b16 %v606, %v605
        %v631 = vpack.c.b16 %v608, %v607
        %v632 = vpack.c.b16 %v610, %v609
        %v633 = vpack.c.b16 %v612, %v611
        %v634 = vpack.c.b16 %v614, %v613
        %v635 = vpack.c.b16 %v616, %v615
        %v636 = vpack.c.b16 %v618, %v617
        %v637 = vpack.c.b16 %v620, %v619
        %v638 = vpack.c.b16 %v622, %v621
        %v643 = vunpack.c.l.b16 %v548
        %v644 = vunpack.c.l.b16 %v549
        %v645 = vunpack.c.l.b16 %v550
        %v646 = vunpack.c.l.b16 %v551
        %v647 = vpack.c.b16 %v644, %v643
        %v648 = vpack.c.b16 %v646, %v645
        %vm651 = vcmask 261120
        %v653 = vsel %vm651, %v623, 0
        %v656 = vsel %vm651, %v624, 0
        %v659 = vsel %vm651, %v625, 0
        %v662 = vsel %vm651, %v626, 0
        %v665 = vsel %vm651, %v627, 0
        %v668 = vsel %vm651, %v628, 0
        %v671 = vsel %vm651, %v629, 0
        %v674 = vsel %vm651, %v630, 0
        %v677 = vsel %vm651, %v631, 0
        %v680 = vsel %vm651, %v632, 0
        %v683 = vsel %vm651, %v633, 0
        %v686 = vsel %vm651, %v634, 0
        %v689 = vsel %vm651, %v635, 0
        %v692 = vsel %vm651, %v636, 0
        %v695 = vsel %vm651, %v637, 0
        %v698 = vsel %vm651, %v638, 0
        %700 = vmatprep.subr.bf16.mxu0 0
        %701 = vmatpush1.bf16.msra.mxu0 %v647
        %702 = vmatprep.subr.bf16.mxu0 0
        %703 = vmatpush1.bf16.msra.mxu0 %v648
        %704 = vmatprep.subr.bf16.mxu0 0
        %705 = vmatpush1.bf16.msra.mxu0 0
        %706 = vmatprep.subr.bf16.mxu0 0
        %707 = vmatpush1.bf16.msra.mxu0 0
        %708 = vmatprep.subr.bf16.mxu0 0
        %709 = vmatpush1.bf16.msra.mxu0 0
        %710 = vmatprep.subr.bf16.mxu0 0
        %711 = vmatpush1.bf16.msra.mxu0 0
        %712 = vmatprep.subr.bf16.mxu0 0
        %713 = vmatpush1.bf16.msra.mxu0 0
        %714 = vmatprep.subr.bf16.mxu0 0
        %715 = vmatpush1.bf16.msra.mxu0 0
        %716 = vmatprep.subr.bf16.mxu0 0
        %717 = vmatpush1.bf16.msra.mxu0 0
        %718 = vmatprep.subr.bf16.mxu0 0
        %719 = vmatpush1.bf16.msra.mxu0 0
        %720 = vmatprep.subr.bf16.mxu0 0
        %721 = vmatpush1.bf16.msra.mxu0 0
        %722 = vmatprep.subr.bf16.mxu0 0
        %723 = vmatpush1.bf16.msra.mxu0 0
        %724 = vmatprep.subr.bf16.mxu0 0
        %725 = vmatpush1.bf16.msra.mxu0 0
        %726 = vmatprep.subr.bf16.mxu0 0
        %727 = vmatpush1.bf16.msra.mxu0 0
        %728 = vmatprep.subr.bf16.mxu0 0
        %729 = vmatpush1.bf16.msra.mxu0 0
        %730 = vmatprep.subr.bf16.mxu0 0
        %731 = vmatpush1.bf16.msra.mxu0 0
        %732 = vmatprep.mubr.bf16.mxu0 0
        %733 = vmatmul.mubr.bf16.gmra.mrb[0].mxu0 %v653
        %v734 = vpop.f32.mrb[0].mxu0
        %v735 = vadd.f32 %v557, %v734
        %v736 = vpop.f32.mrb[0].mxu0
        %v737 = vpop.f32.mrb[0].mxu0
        %v738 = vadd.f32 %v557, %v737
        %v739 = vpop.f32.mrb[0].mxu0
        %740 = vmatprep.mubr.bf16.mxu0 0
        %741 = vmatmul.mubr.bf16.gmra.mrb[0].mxu0 %v656
        %v742 = vpop.f32.mrb[0].mxu0
        %v743 = vadd.f32 %v557, %v742
        %v744 = vpop.f32.mrb[0].mxu0
        %v745 = vpop.f32.mrb[0].mxu0
        %v746 = vadd.f32 %v557, %v745
        %v747 = vpop.f32.mrb[0].mxu0
        %748 = vmatprep.mubr.bf16.mxu0 0
        %749 = vmatmul.mubr.bf16.gmra.mrb[0].mxu0 %v659
        %v750 = vpop.f32.mrb[0].mxu0
        %v751 = vadd.f32 %v557, %v750
        %v752 = vpop.f32.mrb[0].mxu0
        %v753 = vpop.f32.mrb[0].mxu0
        %v754 = vadd.f32 %v557, %v753
        %v755 = vpop.f32.mrb[0].mxu0
        %756 = vmatprep.mubr.bf16.mxu0 0
        %757 = vmatmul.mubr.bf16.gmra.mrb[0].mxu0 %v662
        %v758 = vpop.f32.mrb[0].mxu0
        %v759 = vadd.f32 %v557, %v758
        %v760 = vpop.f32.mrb[0].mxu0
        %v761 = vpop.f32.mrb[0].mxu0
        %v762 = vadd.f32 %v557, %v761
        %v763 = vpop.f32.mrb[0].mxu0
        %764 = vmatprep.mubr.bf16.mxu0 0
        %765 = vmatmul.mubr.bf16.gmra.mrb[0].mxu0 %v665
        %v766 = vpop.f32.mrb[0].mxu0
        %v767 = vadd.f32 %v557, %v766
        %v768 = vpop.f32.mrb[0].mxu0
        %v769 = vpop.f32.mrb[0].mxu0
        %v770 = vadd.f32 %v557, %v769
        %v771 = vpop.f32.mrb[0].mxu0
        %772 = vmatprep.mubr.bf16.mxu0 0
        %773 = vmatmul.mubr.bf16.gmra.mrb[0].mxu0 %v668
        %v774 = vpop.f32.mrb[0].mxu0
        %v775 = vadd.f32 %v557, %v774
        %v776 = vpop.f32.mrb[0].mxu0
        %v777 = vpop.f32.mrb[0].mxu0
        %v778 = vadd.f32 %v557, %v777
        %v779 = vpop.f32.mrb[0].mxu0
        %780 = vmatprep.mubr.bf16.mxu0 0
        %781 = vmatmul.mubr.bf16.gmra.mrb[0].mxu0 %v671
        %v782 = vpop.f32.mrb[0].mxu0
        %v783 = vadd.f32 %v557, %v782
        %v784 = vpop.f32.mrb[0].mxu0
        %v785 = vpop.f32.mrb[0].mxu0
        %v786 = vadd.f32 %v557, %v785
        %v787 = vpop.f32.mrb[0].mxu0
        %788 = vmatprep.mubr.bf16.mxu0 0
        %789 = vmatmul.mubr.bf16.gmra.mrb[0].mxu0 %v674
        %v790 = vpop.f32.mrb[0].mxu0
        %v791 = vadd.f32 %v557, %v790
        %v792 = vpop.f32.mrb[0].mxu0
        %v793 = vpop.f32.mrb[0].mxu0
        %v794 = vadd.f32 %v557, %v793
        %v795 = vpop.f32.mrb[0].mxu0
        %796 = vmatprep.mubr.bf16.mxu0 0
        %797 = vmatmul.mubr.bf16.gmra.mrb[0].mxu0 %v677
        %v798 = vpop.f32.mrb[0].mxu0
        %v799 = vadd.f32 %v557, %v798
        %v800 = vpop.f32.mrb[0].mxu0
        %v801 = vpop.f32.mrb[0].mxu0
        %v802 = vadd.f32 %v557, %v801
        %v803 = vpop.f32.mrb[0].mxu0
        %804 = vmatprep.mubr.bf16.mxu0 0
        %805 = vmatmul.mubr.bf16.gmra.mrb[0].mxu0 %v680
        %v806 = vpop.f32.mrb[0].mxu0
        %v807 = vadd.f32 %v557, %v806
        %v808 = vpop.f32.mrb[0].mxu0
        %v809 = vpop.f32.mrb[0].mxu0
        %v810 = vadd.f32 %v557, %v809
        %v811 = vpop.f32.mrb[0].mxu0
        %812 = vmatprep.mubr.bf16.mxu0 0
        %813 = vmatmul.mubr.bf16.gmra.mrb[0].mxu0 %v683
        %v814 = vpop.f32.mrb[0].mxu0
        %v815 = vadd.f32 %v557, %v814
        %v816 = vpop.f32.mrb[0].mxu0
        %v817 = vpop.f32.mrb[0].mxu0
        %v818 = vadd.f32 %v557, %v817
        %v819 = vpop.f32.mrb[0].mxu0
        %820 = vmatprep.mubr.bf16.mxu0 0
        %821 = vmatmul.mubr.bf16.gmra.mrb[0].mxu0 %v686
        %v822 = vpop.f32.mrb[0].mxu0
        %v823 = vadd.f32 %v557, %v822
        %v824 = vpop.f32.mrb[0].mxu0
        %v825 = vpop.f32.mrb[0].mxu0
        %v826 = vadd.f32 %v557, %v825
        %v827 = vpop.f32.mrb[0].mxu0
        %828 = vmatprep.mubr.bf16.mxu0 0
        %829 = vmatmul.mubr.bf16.gmra.mrb[0].mxu0 %v689
        %v830 = vpop.f32.mrb[0].mxu0
        %v831 = vadd.f32 %v557, %v830
        %v832 = vpop.f32.mrb[0].mxu0
        %v833 = vpop.f32.mrb[0].mxu0
        %v834 = vadd.f32 %v557, %v833
        %v835 = vpop.f32.mrb[0].mxu0
        %836 = vmatprep.mubr.bf16.mxu0 0
        %837 = vmatmul.mubr.bf16.gmra.mrb[0].mxu0 %v692
        %v838 = vpop.f32.mrb[0].mxu0
        %v839 = vadd.f32 %v557, %v838
        %v840 = vpop.f32.mrb[0].mxu0
        %v841 = vpop.f32.mrb[0].mxu0
        %v842 = vadd.f32 %v557, %v841
        %v843 = vpop.f32.mrb[0].mxu0
        %844 = vmatprep.mubr.bf16.mxu0 0
        %845 = vmatmul.mubr.bf16.gmra.mrb[0].mxu0 %v695
        %v846 = vpop.f32.mrb[0].mxu0
        %v847 = vadd.f32 %v557, %v846
        %v848 = vpop.f32.mrb[0].mxu0
        %v849 = vpop.f32.mrb[0].mxu0
        %v850 = vadd.f32 %v557, %v849
        %v851 = vpop.f32.mrb[0].mxu0
        %852 = vmatprep.mubr.bf16.mxu0 0
        %853 = vmatmul.mubr.bf16.gmra.mrb[0].mxu0 %v698
        %v854 = vpop.f32.mrb[0].mxu0
        %v855 = vadd.f32 %v557, %v854
        %v856 = vpop.f32.mrb[0].mxu0
        %v857 = vpop.f32.mrb[0].mxu0
        %v858 = vadd.f32 %v557, %v857
        %v859 = vpop.f32.mrb[0].mxu0
        %860 = vdwg.mxu0
        %v861 = vmax.f32 %v735, 0.0
        %v862 = vmax.f32 %v738, 0.0
        %v863 = vmax.f32 %v743, 0.0
        %v864 = vmax.f32 %v746, 0.0
        %v865 = vmax.f32 %v751, 0.0
        %v866 = vmax.f32 %v754, 0.0
        %v867 = vmax.f32 %v759, 0.0
        %v868 = vmax.f32 %v762, 0.0
        %v869 = vmax.f32 %v767, 0.0
        %v870 = vmax.f32 %v770, 0.0
        %v871 = vmax.f32 %v775, 0.0
        %v872 = vmax.f32 %v778, 0.0
        %v873 = vmax.f32 %v783, 0.0
        %v874 = vmax.f32 %v786, 0.0
        %v875 = vmax.f32 %v791, 0.0
        %v876 = vmax.f32 %v794, 0.0
        %v877 = vmax.f32 %v799, 0.0
        %v878 = vmax.f32 %v802, 0.0
        %v879 = vmax.f32 %v807, 0.0
        %v880 = vmax.f32 %v810, 0.0
        %v881 = vmax.f32 %v815, 0.0
        %v882 = vmax.f32 %v818, 0.0
        %v883 = vmax.f32 %v823, 0.0
        %v884 = vmax.f32 %v826, 0.0
        %v885 = vmax.f32 %v831, 0.0
        %v886 = vmax.f32 %v834, 0.0
        %v887 = vmax.f32 %v839, 0.0
        %v888 = vmax.f32 %v842, 0.0
        %v889 = vmax.f32 %v847, 0.0
        %v890 = vmax.f32 %v850, 0.0
        %v891 = vmax.f32 %v855, 0.0
        %v892 = vmax.f32 %v858, 0.0
        %v893 = vpack.c.bf16 %v862, %v861
        %v894 = vpack.c.bf16 %v864, %v863
        %v895 = vpack.c.bf16 %v866, %v865
        %v896 = vpack.c.bf16 %v868, %v867
        %v897 = vpack.c.bf16 %v870, %v869
        %v898 = vpack.c.bf16 %v872, %v871
        %v899 = vpack.c.bf16 %v874, %v873
        %v900 = vpack.c.bf16 %v876, %v875
        %v901 = vpack.c.bf16 %v878, %v877
        %v902 = vpack.c.bf16 %v880, %v879
        %v903 = vpack.c.bf16 %v882, %v881
        %v904 = vpack.c.bf16 %v884, %v883
        %v905 = vpack.c.bf16 %v886, %v885
        %v906 = vpack.c.bf16 %v888, %v887
        %v907 = vpack.c.bf16 %v890, %v889
        %v908 = vpack.c.bf16 %v892, %v891
        %v909 = vld [vmem:[%s5] sm:$0xf]
        %v910 = vld [vmem:[%s5 + $0x4] sm:$0xf]
        %v911 = vld [vmem:[%s5 + $0x8] sm:$0xf]
        %v912 = vld [vmem:[%s5 + $0xc] sm:$0xf]
        %v913 = vld [vmem:[%s5 + $0x10] sm:$0xf]
        %v914 = vld [vmem:[%s5 + $0x14] sm:$0xf]
        %v915 = vld [vmem:[%s5 + $0x18] sm:$0xf]
        %v916 = vld [vmem:[%s5 + $0x1c] sm:$0xf]
        %v917 = vld [vmem:[%s5 + $0x20] sm:$0xf]
        %v918 = vld [vmem:[%s5 + $0x24] sm:$0xf]
        %v919 = vld [vmem:[%s5 + $0x28] sm:$0xf]
        %v920 = vld [vmem:[%s5 + $0x2c] sm:$0xf]
        %v921 = vld [vmem:[%s5 + $0x30] sm:$0xf]
        %v922 = vld [vmem:[%s5 + $0x34] sm:$0xf]
        %v923 = vld [vmem:[%s5 + $0x38] sm:$0xf]
        %v924 = vld [vmem:[%s5 + $0x3c] sm:$0xf]
        %v925 = vld [vmem:[%s6] sm:$0x1]
        %v927 = vlaneseq
        %v928 = vshrl.u32 %v927, 7
        %v929 = vsub.s32 0, %v928
        %v930 = vrot.slane %v925, %v929
        %v948 = vunpack.c.l.b16 %v909
        %v949 = vunpack.c.l.b16 %v910
        %v950 = vunpack.c.l.b16 %v911
        %v951 = vunpack.c.l.b16 %v912
        %v952 = vunpack.c.l.b16 %v913
        %v953 = vunpack.c.l.b16 %v914
        %v954 = vunpack.c.l.b16 %v915
        %v955 = vunpack.c.l.b16 %v916
        %v956 = vunpack.c.l.b16 %v917
        %v957 = vunpack.c.l.b16 %v918
        %v958 = vunpack.c.l.b16 %v919
        %v959 = vunpack.c.l.b16 %v920
        %v960 = vunpack.c.l.b16 %v921
        %v961 = vunpack.c.l.b16 %v922
        %v962 = vunpack.c.l.b16 %v923
        %v963 = vunpack.c.l.b16 %v924
        %v964 = vpack.c.b16 %v949, %v948
        %v965 = vpack.c.b16 %v951, %v950
        %v966 = vpack.c.b16 %v953, %v952
        %v967 = vpack.c.b16 %v955, %v954
        %v968 = vpack.c.b16 %v957, %v956
        %v969 = vpack.c.b16 %v959, %v958
        %v970 = vpack.c.b16 %v961, %v960
        %v971 = vpack.c.b16 %v963, %v962
        %980 = vmatprep.subr.bf16.mxu0 0
        %981 = vmatpush1.bf16.msra.mxu0 %v964
        %982 = vmatprep.subr.bf16.mxu0 0
        %983 = vmatpush1.bf16.msra.mxu0 %v965
        %984 = vmatprep.subr.bf16.mxu0 0
        %985 = vmatpush1.bf16.msra.mxu0 %v966
        %986 = vmatprep.subr.bf16.mxu0 0
        %987 = vmatpush1.bf16.msra.mxu0 %v967
        %988 = vmatprep.subr.bf16.mxu0 0
        %989 = vmatpush1.bf16.msra.mxu0 %v968
        %990 = vmatprep.subr.bf16.mxu0 0
        %991 = vmatpush1.bf16.msra.mxu0 %v969
        %992 = vmatprep.subr.bf16.mxu0 0
        %993 = vmatpush1.bf16.msra.mxu0 %v970
        %994 = vmatprep.subr.bf16.mxu0 0
        %995 = vmatpush1.bf16.msra.mxu0 %v971
        %996 = vmatprep.subr.bf16.mxu0 0
        %997 = vmatpush1.bf16.msra.mxu0 0
        %998 = vmatprep.subr.bf16.mxu0 0
        %999 = vmatpush1.bf16.msra.mxu0 0
        %1000 = vmatprep.subr.bf16.mxu0 0
        %1001 = vmatpush1.bf16.msra.mxu0 0
        %1002 = vmatprep.subr.bf16.mxu0 0
        %1003 = vmatpush1.bf16.msra.mxu0 0
        %1004 = vmatprep.subr.bf16.mxu0 0
        %1005 = vmatpush1.bf16.msra.mxu0 0
        %1006 = vmatprep.subr.bf16.mxu0 0
        %1007 = vmatpush1.bf16.msra.mxu0 0
        %1008 = vmatprep.subr.bf16.mxu0 0
        %1009 = vmatpush1.bf16.msra.mxu0 0
        %1010 = vmatprep.subr.bf16.mxu0 0
        %1011 = vmatpush1.bf16.msra.mxu0 0
        %1012 = vmatprep.mubr.bf16.mxu0 0
        %1013 = vmatmul.mubr.bf16.gmra.mrb[0].mxu0 %v893
        %v1014 = vpop.f32.mrb[0].mxu0
        %v1015 = vadd.f32 %v930, %v1014
        %v1016 = vpop.f32.mrb[0].mxu0
        %v1017 = vpop.f32.mrb[0].mxu0
        %v1018 = vadd.f32 %v930, %v1017
        %v1019 = vpop.f32.mrb[0].mxu0
        %1020 = vmatprep.mubr.bf16.mxu0 0
        %1021 = vmatmul.mubr.bf16.gmra.mrb[0].mxu0 %v894
        %v1022 = vpop.f32.mrb[0].mxu0
        %v1023 = vadd.f32 %v930, %v1022
        %v1024 = vpop.f32.mrb[0].mxu0
        %v1025 = vpop.f32.mrb[0].mxu0
        %v1026 = vadd.f32 %v930, %v1025
        %v1027 = vpop.f32.mrb[0].mxu0
        %1028 = vmatprep.mubr.bf16.mxu0 0
        %1029 = vmatmul.mubr.bf16.gmra.mrb[0].mxu0 %v895
        %v1030 = vpop.f32.mrb[0].mxu0
        %v1031 = vadd.f32 %v930, %v1030
        %v1032 = vpop.f32.mrb[0].mxu0
        %v1033 = vpop.f32.mrb[0].mxu0
        %v1034 = vadd.f32 %v930, %v1033
        %v1035 = vpop.f32.mrb[0].mxu0
        %1036 = vmatprep.mubr.bf16.mxu0 0
        %1037 = vmatmul.mubr.bf16.gmra.mrb[0].mxu0 %v896
        %v1038 = vpop.f32.mrb[0].mxu0
        %v1039 = vadd.f32 %v930, %v1038
        %v1040 = vpop.f32.mrb[0].mxu0
        %v1041 = vpop.f32.mrb[0].mxu0
        %v1042 = vadd.f32 %v930, %v1041
        %v1043 = vpop.f32.mrb[0].mxu0
        %1044 = vmatprep.mubr.bf16.mxu0 0
        %1045 = vmatmul.mubr.bf16.gmra.mrb[0].mxu0 %v897
        %v1046 = vpop.f32.mrb[0].mxu0
        %v1047 = vadd.f32 %v930, %v1046
        %v1048 = vpop.f32.mrb[0].mxu0
        %v1049 = vpop.f32.mrb[0].mxu0
        %v1050 = vadd.f32 %v930, %v1049
        %v1051 = vpop.f32.mrb[0].mxu0
        %1052 = vmatprep.mubr.bf16.mxu0 0
        %1053 = vmatmul.mubr.bf16.gmra.mrb[0].mxu0 %v898
        %v1054 = vpop.f32.mrb[0].mxu0
        %v1055 = vadd.f32 %v930, %v1054
        %v1056 = vpop.f32.mrb[0].mxu0
        %v1057 = vpop.f32.mrb[0].mxu0
        %v1058 = vadd.f32 %v930, %v1057
        %v1059 = vpop.f32.mrb[0].mxu0
        %1060 = vmatprep.mubr.bf16.mxu0 0
        %1061 = vmatmul.mubr.bf16.gmra.mrb[0].mxu0 %v899
        %v1062 = vpop.f32.mrb[0].mxu0
        %v1063 = vadd.f32 %v930, %v1062
        %v1064 = vpop.f32.mrb[0].mxu0
        %v1065 = vpop.f32.mrb[0].mxu0
        %v1066 = vadd.f32 %v930, %v1065
        %v1067 = vpop.f32.mrb[0].mxu0
        %1068 = vmatprep.mubr.bf16.mxu0 0
        %1069 = vmatmul.mubr.bf16.gmra.mrb[0].mxu0 %v900
        %v1070 = vpop.f32.mrb[0].mxu0
        %v1071 = vadd.f32 %v930, %v1070
        %v1072 = vpop.f32.mrb[0].mxu0
        %v1073 = vpop.f32.mrb[0].mxu0
        %v1074 = vadd.f32 %v930, %v1073
        %v1075 = vpop.f32.mrb[0].mxu0
        %1076 = vmatprep.mubr.bf16.mxu0 0
        %1077 = vmatmul.mubr.bf16.gmra.mrb[0].mxu0 %v901
        %v1078 = vpop.f32.mrb[0].mxu0
        %v1079 = vadd.f32 %v930, %v1078
        %v1080 = vpop.f32.mrb[0].mxu0
        %v1081 = vpop.f32.mrb[0].mxu0
        %v1082 = vadd.f32 %v930, %v1081
        %v1083 = vpop.f32.mrb[0].mxu0
        %1084 = vmatprep.mubr.bf16.mxu0 0
        %1085 = vmatmul.mubr.bf16.gmra.mrb[0].mxu0 %v902
        %v1086 = vpop.f32.mrb[0].mxu0
        %v1087 = vadd.f32 %v930, %v1086
        %v1088 = vpop.f32.mrb[0].mxu0
        %v1089 = vpop.f32.mrb[0].mxu0
        %v1090 = vadd.f32 %v930, %v1089
        %v1091 = vpop.f32.mrb[0].mxu0
        %1092 = vmatprep.mubr.bf16.mxu0 0
        %1093 = vmatmul.mubr.bf16.gmra.mrb[0].mxu0 %v903
        %v1094 = vpop.f32.mrb[0].mxu0
        %v1095 = vadd.f32 %v930, %v1094
        %v1096 = vpop.f32.mrb[0].mxu0
        %v1097 = vpop.f32.mrb[0].mxu0
        %v1098 = vadd.f32 %v930, %v1097
        %v1099 = vpop.f32.mrb[0].mxu0
        %1100 = vmatprep.mubr.bf16.mxu0 0
        %1101 = vmatmul.mubr.bf16.gmra.mrb[0].mxu0 %v904
        %v1102 = vpop.f32.mrb[0].mxu0
        %v1103 = vadd.f32 %v930, %v1102
        %v1104 = vpop.f32.mrb[0].mxu0
        %v1105 = vpop.f32.mrb[0].mxu0
        %v1106 = vadd.f32 %v930, %v1105
        %v1107 = vpop.f32.mrb[0].mxu0
        %1108 = vmatprep.mubr.bf16.mxu0 0
        %1109 = vmatmul.mubr.bf16.gmra.mrb[0].mxu0 %v905
        %v1110 = vpop.f32.mrb[0].mxu0
        %v1111 = vadd.f32 %v930, %v1110
        %v1112 = vpop.f32.mrb[0].mxu0
        %v1113 = vpop.f32.mrb[0].mxu0
        %v1114 = vadd.f32 %v930, %v1113
        %v1115 = vpop.f32.mrb[0].mxu0
        %1116 = vmatprep.mubr.bf16.mxu0 0
        %1117 = vmatmul.mubr.bf16.gmra.mrb[0].mxu0 %v906
        %v1118 = vpop.f32.mrb[0].mxu0
        %v1119 = vadd.f32 %v930, %v1118
        %v1120 = vpop.f32.mrb[0].mxu0
        %v1121 = vpop.f32.mrb[0].mxu0
        %v1122 = vadd.f32 %v930, %v1121
        %v1123 = vpop.f32.mrb[0].mxu0
        %1124 = vmatprep.mubr.bf16.mxu0 0
        %1125 = vmatmul.mubr.bf16.gmra.mrb[0].mxu0 %v907
        %v1126 = vpop.f32.mrb[0].mxu0
        %v1127 = vadd.f32 %v930, %v1126
        %v1128 = vpop.f32.mrb[0].mxu0
        %v1129 = vpop.f32.mrb[0].mxu0
        %v1130 = vadd.f32 %v930, %v1129
        %v1131 = vpop.f32.mrb[0].mxu0
        %1132 = vmatprep.mubr.bf16.mxu0 0
        %1133 = vmatmul.mubr.bf16.gmra.mrb[0].mxu0 %v908
        %v1134 = vpop.f32.mrb[0].mxu0
        %v1135 = vadd.f32 %v930, %v1134
        %v1136 = vpop.f32.mrb[0].mxu0
        %v1137 = vpop.f32.mrb[0].mxu0
        %v1138 = vadd.f32 %v930, %v1137
        %v1139 = vpop.f32.mrb[0].mxu0
        %1140 = vdwg.mxu0
        %v1141 = vmax.f32 %v1015, 0.0
        %v1142 = vmax.f32 %v1018, 0.0
        %v1143 = vmax.f32 %v1023, 0.0
        %v1144 = vmax.f32 %v1026, 0.0
        %v1145 = vmax.f32 %v1031, 0.0
        %v1146 = vmax.f32 %v1034, 0.0
        %v1147 = vmax.f32 %v1039, 0.0
        %v1148 = vmax.f32 %v1042, 0.0
        %v1149 = vmax.f32 %v1047, 0.0
        %v1150 = vmax.f32 %v1050, 0.0
        %v1151 = vmax.f32 %v1055, 0.0
        %v1152 = vmax.f32 %v1058, 0.0
        %v1153 = vmax.f32 %v1063, 0.0
        %v1154 = vmax.f32 %v1066, 0.0
        %v1155 = vmax.f32 %v1071, 0.0
        %v1156 = vmax.f32 %v1074, 0.0
        %v1157 = vmax.f32 %v1079, 0.0
        %v1158 = vmax.f32 %v1082, 0.0
        %v1159 = vmax.f32 %v1087, 0.0
        %v1160 = vmax.f32 %v1090, 0.0
        %v1161 = vmax.f32 %v1095, 0.0
        %v1162 = vmax.f32 %v1098, 0.0
        %v1163 = vmax.f32 %v1103, 0.0
        %v1164 = vmax.f32 %v1106, 0.0
        %v1165 = vmax.f32 %v1111, 0.0
        %v1166 = vmax.f32 %v1114, 0.0
        %v1167 = vmax.f32 %v1119, 0.0
        %v1168 = vmax.f32 %v1122, 0.0
        %v1169 = vmax.f32 %v1127, 0.0
        %v1170 = vmax.f32 %v1130, 0.0
        %v1171 = vmax.f32 %v1135, 0.0
        %v1172 = vmax.f32 %v1138, 0.0
        %v1173 = vpack.c.bf16 %v1142, %v1141
        %v1174 = vpack.c.bf16 %v1144, %v1143
        %v1175 = vpack.c.bf16 %v1146, %v1145
        %v1176 = vpack.c.bf16 %v1148, %v1147
        %v1177 = vpack.c.bf16 %v1150, %v1149
        %v1178 = vpack.c.bf16 %v1152, %v1151
        %v1179 = vpack.c.bf16 %v1154, %v1153
        %v1180 = vpack.c.bf16 %v1156, %v1155
        %v1181 = vpack.c.bf16 %v1158, %v1157
        %v1182 = vpack.c.bf16 %v1160, %v1159
        %v1183 = vpack.c.bf16 %v1162, %v1161
        %v1184 = vpack.c.bf16 %v1164, %v1163
        %v1185 = vpack.c.bf16 %v1166, %v1165
        %v1186 = vpack.c.bf16 %v1168, %v1167
        %v1187 = vpack.c.bf16 %v1170, %v1169
        %v1188 = vpack.c.bf16 %v1172, %v1171
        %v1205 = vunpack.c.l.b16 %v516
        %v1206 = vunpack.c.l.b16 %v517
        %v1207 = vunpack.c.l.b16 %v518
        %v1208 = vunpack.c.l.b16 %v519
        %v1209 = vunpack.c.l.b16 %v520
        %v1210 = vunpack.c.l.b16 %v521
        %v1211 = vunpack.c.l.b16 %v522
        %v1212 = vunpack.c.l.b16 %v523
        %v1213 = vunpack.c.l.b16 %v524
        %v1214 = vunpack.c.l.b16 %v525
        %v1215 = vunpack.c.l.b16 %v526
        %v1216 = vunpack.c.l.b16 %v527
        %v1217 = vunpack.c.l.b16 %v528
        %v1218 = vunpack.c.l.b16 %v529
        %v1219 = vunpack.c.l.b16 %v530
        %v1220 = vunpack.c.l.b16 %v531
        %v1221 = vpack.c.b16 %v1206, %v1205
        %v1222 = vpack.c.b16 %v1208, %v1207
        %v1223 = vpack.c.b16 %v1210, %v1209
        %v1224 = vpack.c.b16 %v1212, %v1211
        %v1225 = vpack.c.b16 %v1214, %v1213
        %v1226 = vpack.c.b16 %v1216, %v1215
        %v1227 = vpack.c.b16 %v1218, %v1217
        %v1228 = vpack.c.b16 %v1220, %v1219
        %1237 = vmatprep.subr.bf16.mxu0 0
        %1238 = vmatpush1.bf16.msra.mxu0 %v1221
        %1239 = vmatprep.subr.bf16.mxu0 0
        %1240 = vmatpush1.bf16.msra.mxu0 %v1222
        %1241 = vmatprep.subr.bf16.mxu0 0
        %1242 = vmatpush1.bf16.msra.mxu0 %v1223
        %1243 = vmatprep.subr.bf16.mxu0 0
        %1244 = vmatpush1.bf16.msra.mxu0 %v1224
        %1245 = vmatprep.subr.bf16.mxu0 0
        %1246 = vmatpush1.bf16.msra.mxu0 %v1225
        %1247 = vmatprep.subr.bf16.mxu0 0
        %1248 = vmatpush1.bf16.msra.mxu0 %v1226
        %1249 = vmatprep.subr.bf16.mxu0 0
        %1250 = vmatpush1.bf16.msra.mxu0 %v1227
        %1251 = vmatprep.subr.bf16.mxu0 0
        %1252 = vmatpush1.bf16.msra.mxu0 %v1228
        %1253 = vmatprep.subr.bf16.mxu0 0
        %1254 = vmatpush1.bf16.msra.mxu0 0
        %1255 = vmatprep.subr.bf16.mxu0 0
        %1256 = vmatpush1.bf16.msra.mxu0 0
        %1257 = vmatprep.subr.bf16.mxu0 0
        %1258 = vmatpush1.bf16.msra.mxu0 0
        %1259 = vmatprep.subr.bf16.mxu0 0
        %1260 = vmatpush1.bf16.msra.mxu0 0
        %1261 = vmatprep.subr.bf16.mxu0 0
        %1262 = vmatpush1.bf16.msra.mxu0 0
        %1263 = vmatprep.subr.bf16.mxu0 0
        %1264 = vmatpush1.bf16.msra.mxu0 0
        %1265 = vmatprep.subr.bf16.mxu0 0
        %1266 = vmatpush1.bf16.msra.mxu0 0
        %1267 = vmatprep.subr.bf16.mxu0 0
        %1268 = vmatpush1.bf16.msra.mxu0 0
        %1269 = vmatprep.mubr.bf16.mxu0 0
        %1270 = vmatmul.mubr.bf16.gmra.mrb[0].mxu0 %v1173
        %v1271 = vpop.f32.mrb[0].mxu0
        %v1272 = vadd.f32 0.0, %v1271
        %v1273 = vpop.f32.mrb[0].mxu0
        %v1274 = vpop.f32.mrb[0].mxu0
        %v1275 = vadd.f32 0.0, %v1274
        %v1276 = vpop.f32.mrb[0].mxu0
        %1277 = vmatprep.mubr.bf16.mxu0 0
        %1278 = vmatmul.mubr.bf16.gmra.mrb[0].mxu0 %v1174
        %v1279 = vpop.f32.mrb[0].mxu0
        %v1280 = vadd.f32 0.0, %v1279
        %v1281 = vpop.f32.mrb[0].mxu0
        %v1282 = vpop.f32.mrb[0].mxu0
        %v1283 = vadd.f32 0.0, %v1282
        %v1284 = vpop.f32.mrb[0].mxu0
        %1285 = vmatprep.mubr.bf16.mxu0 0
        %1286 = vmatmul.mubr.bf16.gmra.mrb[0].mxu0 %v1175
        %v1287 = vpop.f32.mrb[0].mxu0
        %v1288 = vadd.f32 0.0, %v1287
        %v1289 = vpop.f32.mrb[0].mxu0
        %v1290 = vpop.f32.mrb[0].mxu0
        %v1291 = vadd.f32 0.0, %v1290
        %v1292 = vpop.f32.mrb[0].mxu0
        %1293 = vmatprep.mubr.bf16.mxu0 0
        %1294 = vmatmul.mubr.bf16.gmra.mrb[0].mxu0 %v1176
        %v1295 = vpop.f32.mrb[0].mxu0
        %v1296 = vadd.f32 0.0, %v1295
        %v1297 = vpop.f32.mrb[0].mxu0
        %v1298 = vpop.f32.mrb[0].mxu0
        %v1299 = vadd.f32 0.0, %v1298
        %v1300 = vpop.f32.mrb[0].mxu0
        %1301 = vmatprep.mubr.bf16.mxu0 0
        %1302 = vmatmul.mubr.bf16.gmra.mrb[0].mxu0 %v1177
        %v1303 = vpop.f32.mrb[0].mxu0
        %v1304 = vadd.f32 0.0, %v1303
        %v1305 = vpop.f32.mrb[0].mxu0
        %v1306 = vpop.f32.mrb[0].mxu0
        %v1307 = vadd.f32 0.0, %v1306
        %v1308 = vpop.f32.mrb[0].mxu0
        %1309 = vmatprep.mubr.bf16.mxu0 0
        %1310 = vmatmul.mubr.bf16.gmra.mrb[0].mxu0 %v1178
        %v1311 = vpop.f32.mrb[0].mxu0
        %v1312 = vadd.f32 0.0, %v1311
        %v1313 = vpop.f32.mrb[0].mxu0
        %v1314 = vpop.f32.mrb[0].mxu0
        %v1315 = vadd.f32 0.0, %v1314
        %v1316 = vpop.f32.mrb[0].mxu0
        %1317 = vmatprep.mubr.bf16.mxu0 0
        %1318 = vmatmul.mubr.bf16.gmra.mrb[0].mxu0 %v1179
        %v1319 = vpop.f32.mrb[0].mxu0
        %v1320 = vadd.f32 0.0, %v1319
        %v1321 = vpop.f32.mrb[0].mxu0
        %v1322 = vpop.f32.mrb[0].mxu0
        %v1323 = vadd.f32 0.0, %v1322
        %v1324 = vpop.f32.mrb[0].mxu0
        %1325 = vmatprep.mubr.bf16.mxu0 0
        %1326 = vmatmul.mubr.bf16.gmra.mrb[0].mxu0 %v1180
        %v1327 = vpop.f32.mrb[0].mxu0
        %v1328 = vadd.f32 0.0, %v1327
        %v1329 = vpop.f32.mrb[0].mxu0
        %v1330 = vpop.f32.mrb[0].mxu0
        %v1331 = vadd.f32 0.0, %v1330
        %v1332 = vpop.f32.mrb[0].mxu0
        %1333 = vmatprep.mubr.bf16.mxu0 0
        %1334 = vmatmul.mubr.bf16.gmra.mrb[0].mxu0 %v1181
        %v1335 = vpop.f32.mrb[0].mxu0
        %v1336 = vadd.f32 0.0, %v1335
        %v1337 = vpop.f32.mrb[0].mxu0
        %v1338 = vpop.f32.mrb[0].mxu0
        %v1339 = vadd.f32 0.0, %v1338
        %v1340 = vpop.f32.mrb[0].mxu0
        %1341 = vmatprep.mubr.bf16.mxu0 0
        %1342 = vmatmul.mubr.bf16.gmra.mrb[0].mxu0 %v1182
        %v1343 = vpop.f32.mrb[0].mxu0
        %v1344 = vadd.f32 0.0, %v1343
        %v1345 = vpop.f32.mrb[0].mxu0
        %v1346 = vpop.f32.mrb[0].mxu0
        %v1347 = vadd.f32 0.0, %v1346
        %v1348 = vpop.f32.mrb[0].mxu0
        %1349 = vmatprep.mubr.bf16.mxu0 0
        %1350 = vmatmul.mubr.bf16.gmra.mrb[0].mxu0 %v1183
        %v1351 = vpop.f32.mrb[0].mxu0
        %v1352 = vadd.f32 0.0, %v1351
        %v1353 = vpop.f32.mrb[0].mxu0
        %v1354 = vpop.f32.mrb[0].mxu0
        %v1355 = vadd.f32 0.0, %v1354
        %v1356 = vpop.f32.mrb[0].mxu0
        %1357 = vmatprep.mubr.bf16.mxu0 0
        %1358 = vmatmul.mubr.bf16.gmra.mrb[0].mxu0 %v1184
        %v1359 = vpop.f32.mrb[0].mxu0
        %v1360 = vadd.f32 0.0, %v1359
        %v1361 = vpop.f32.mrb[0].mxu0
        %v1362 = vpop.f32.mrb[0].mxu0
        %v1363 = vadd.f32 0.0, %v1362
        %v1364 = vpop.f32.mrb[0].mxu0
        %1365 = vmatprep.mubr.bf16.mxu0 0
        %1366 = vmatmul.mubr.bf16.gmra.mrb[0].mxu0 %v1185
        %v1367 = vpop.f32.mrb[0].mxu0
        %v1368 = vadd.f32 0.0, %v1367
        %v1369 = vpop.f32.mrb[0].mxu0
        %v1370 = vpop.f32.mrb[0].mxu0
        %v1371 = vadd.f32 0.0, %v1370
        %v1372 = vpop.f32.mrb[0].mxu0
        %1373 = vmatprep.mubr.bf16.mxu0 0
        %1374 = vmatmul.mubr.bf16.gmra.mrb[0].mxu0 %v1186
        %v1375 = vpop.f32.mrb[0].mxu0
        %v1376 = vadd.f32 0.0, %v1375
        %v1377 = vpop.f32.mrb[0].mxu0
        %v1378 = vpop.f32.mrb[0].mxu0
        %v1379 = vadd.f32 0.0, %v1378
        %v1380 = vpop.f32.mrb[0].mxu0
        %1381 = vmatprep.mubr.bf16.mxu0 0
        %1382 = vmatmul.mubr.bf16.gmra.mrb[0].mxu0 %v1187
        %v1383 = vpop.f32.mrb[0].mxu0
        %v1384 = vadd.f32 0.0, %v1383
        %v1385 = vpop.f32.mrb[0].mxu0
        %v1386 = vpop.f32.mrb[0].mxu0
        %v1387 = vadd.f32 0.0, %v1386
        %v1388 = vpop.f32.mrb[0].mxu0
        %1389 = vmatprep.mubr.bf16.mxu0 0
        %1390 = vmatmul.mubr.bf16.gmra.mrb[0].mxu0 %v1188
        %v1391 = vpop.f32.mrb[0].mxu0
        %v1392 = vadd.f32 0.0, %v1391
        %v1393 = vpop.f32.mrb[0].mxu0
        %v1394 = vpop.f32.mrb[0].mxu0
        %v1395 = vadd.f32 0.0, %v1394
        %v1396 = vpop.f32.mrb[0].mxu0
        %1397 = vdwg.mxu0
        %1398 = vmax.xlane.f32.xlu0 %v1272
        %v1399 = vpop.xlane.xlu0 %1398
        %1400 = vmax.xlane.f32.xlu0 %v1275
        %v1401 = vpop.xlane.xlu0 %1400
        %1402 = vmax.xlane.f32.xlu0 %v1280
        %v1403 = vpop.xlane.xlu0 %1402
        %1404 = vmax.xlane.f32.xlu0 %v1283
        %v1405 = vpop.xlane.xlu0 %1404
        %1406 = vmax.xlane.f32.xlu0 %v1288
        %v1407 = vpop.xlane.xlu0 %1406
        %1408 = vmax.xlane.f32.xlu0 %v1291
        %v1409 = vpop.xlane.xlu0 %1408
        %1410 = vmax.xlane.f32.xlu0 %v1296
        %v1411 = vpop.xlane.xlu0 %1410
        %1412 = vmax.xlane.f32.xlu0 %v1299
        %v1413 = vpop.xlane.xlu0 %1412
        %1414 = vmax.xlane.f32.xlu0 %v1304
        %v1415 = vpop.xlane.xlu0 %1414
        %1416 = vmax.xlane.f32.xlu0 %v1307
        %v1417 = vpop.xlane.xlu0 %1416
        %1418 = vmax.xlane.f32.xlu0 %v1312
        %v1419 = vpop.xlane.xlu0 %1418
        %1420 = vmax.xlane.f32.xlu0 %v1315
        %v1421 = vpop.xlane.xlu0 %1420
        %1422 = vmax.xlane.f32.xlu0 %v1320
        %v1423 = vpop.xlane.xlu0 %1422
        %1424 = vmax.xlane.f32.xlu0 %v1323
        %v1425 = vpop.xlane.xlu0 %1424
        %1426 = vmax.xlane.f32.xlu0 %v1328
        %v1427 = vpop.xlane.xlu0 %1426
        %1428 = vmax.xlane.f32.xlu0 %v1331
        %v1429 = vpop.xlane.xlu0 %1428
        %1430 = vmax.xlane.f32.xlu0 %v1336
        %v1431 = vpop.xlane.xlu0 %1430
        %1432 = vmax.xlane.f32.xlu0 %v1339
        %v1433 = vpop.xlane.xlu0 %1432
        %1434 = vmax.xlane.f32.xlu0 %v1344
        %v1435 = vpop.xlane.xlu0 %1434
        %1436 = vmax.xlane.f32.xlu0 %v1347
        %v1437 = vpop.xlane.xlu0 %1436
        %1438 = vmax.xlane.f32.xlu0 %v1352
        %v1439 = vpop.xlane.xlu0 %1438
        %1440 = vmax.xlane.f32.xlu0 %v1355
        %v1441 = vpop.xlane.xlu0 %1440
        %1442 = vmax.xlane.f32.xlu0 %v1360
        %v1443 = vpop.xlane.xlu0 %1442
        %1444 = vmax.xlane.f32.xlu0 %v1363
        %v1445 = vpop.xlane.xlu0 %1444
        %1446 = vmax.xlane.f32.xlu0 %v1368
        %v1447 = vpop.xlane.xlu0 %1446
        %1448 = vmax.xlane.f32.xlu0 %v1371
        %v1449 = vpop.xlane.xlu0 %1448
        %1450 = vmax.xlane.f32.xlu0 %v1376
        %v1451 = vpop.xlane.xlu0 %1450
        %1452 = vmax.xlane.f32.xlu0 %v1379
        %v1453 = vpop.xlane.xlu0 %1452
        %1454 = vmax.xlane.f32.xlu0 %v1384
        %v1455 = vpop.xlane.xlu0 %1454
        %1456 = vmax.xlane.f32.xlu0 %v1387
        %v1457 = vpop.xlane.xlu0 %1456
        %1458 = vmax.xlane.f32.xlu0 %v1392
        %v1459 = vpop.xlane.xlu0 %1458
        %1460 = vmax.xlane.f32.xlu0 %v1395
        %v1461 = vpop.xlane.xlu0 %1460
        %v1462 = vsub.f32 %v1272, %v1399
        %v1463 = vsub.f32 %v1275, %v1401
        %v1464 = vsub.f32 %v1280, %v1403
        %v1465 = vsub.f32 %v1283, %v1405
        %v1466 = vsub.f32 %v1288, %v1407
        %v1467 = vsub.f32 %v1291, %v1409
        %v1468 = vsub.f32 %v1296, %v1411
        %v1469 = vsub.f32 %v1299, %v1413
        %v1470 = vsub.f32 %v1304, %v1415
        %v1471 = vsub.f32 %v1307, %v1417
        %v1472 = vsub.f32 %v1312, %v1419
        %v1473 = vsub.f32 %v1315, %v1421
        %v1474 = vsub.f32 %v1320, %v1423
        %v1475 = vsub.f32 %v1323, %v1425
        %v1476 = vsub.f32 %v1328, %v1427
        %v1477 = vsub.f32 %v1331, %v1429
        %v1478 = vsub.f32 %v1336, %v1431
        %v1479 = vsub.f32 %v1339, %v1433
        %v1480 = vsub.f32 %v1344, %v1435
        %v1481 = vsub.f32 %v1347, %v1437
        %v1482 = vsub.f32 %v1352, %v1439
        %v1483 = vsub.f32 %v1355, %v1441
        %v1484 = vsub.f32 %v1360, %v1443
        %v1485 = vsub.f32 %v1363, %v1445
        %v1486 = vsub.f32 %v1368, %v1447
        %v1487 = vsub.f32 %v1371, %v1449
        %v1488 = vsub.f32 %v1376, %v1451
        %v1489 = vsub.f32 %v1379, %v1453
        %v1490 = vsub.f32 %v1384, %v1455
        %v1491 = vsub.f32 %v1387, %v1457
        %v1492 = vsub.f32 %v1392, %v1459
        %v1493 = vsub.f32 %v1395, %v1461
        %v1494 = vmul.f32 %v1462, 1.442695
        %v1495 = vpow.pop %v1494
        %v1496 = vmul.f32 %v1463, 1.442695
        %v1497 = vpow.pop %v1496
        %v1498 = vmul.f32 %v1464, 1.442695
        %v1499 = vpow.pop %v1498
        %v1500 = vmul.f32 %v1465, 1.442695
        %v1501 = vpow.pop %v1500
        %v1502 = vmul.f32 %v1466, 1.442695
        %v1503 = vpow.pop %v1502
        %v1504 = vmul.f32 %v1467, 1.442695
        %v1505 = vpow.pop %v1504
        %v1506 = vmul.f32 %v1468, 1.442695
        %v1507 = vpow.pop %v1506
        %v1508 = vmul.f32 %v1469, 1.442695
        %v1509 = vpow.pop %v1508
        %v1510 = vmul.f32 %v1470, 1.442695
        %v1511 = vpow.pop %v1510
        %v1512 = vmul.f32 %v1471, 1.442695
        %v1513 = vpow.pop %v1512
        %v1514 = vmul.f32 %v1472, 1.442695
        %v1515 = vpow.pop %v1514
        %v1516 = vmul.f32 %v1473, 1.442695
        %v1517 = vpow.pop %v1516
        %v1518 = vmul.f32 %v1474, 1.442695
        %v1519 = vpow.pop %v1518
        %v1520 = vmul.f32 %v1475, 1.442695
        %v1521 = vpow.pop %v1520
        %v1522 = vmul.f32 %v1476, 1.442695
        %v1523 = vpow.pop %v1522
        %v1524 = vmul.f32 %v1477, 1.442695
        %v1525 = vpow.pop %v1524
        %v1526 = vmul.f32 %v1478, 1.442695
        %v1527 = vpow.pop %v1526
        %v1528 = vmul.f32 %v1479, 1.442695
        %v1529 = vpow.pop %v1528
        %v1530 = vmul.f32 %v1480, 1.442695
        %v1531 = vpow.pop %v1530
        %v1532 = vmul.f32 %v1481, 1.442695
        %v1533 = vpow.pop %v1532
        %v1534 = vmul.f32 %v1482, 1.442695
        %v1535 = vpow.pop %v1534
        %v1536 = vmul.f32 %v1483, 1.442695
        %v1537 = vpow.pop %v1536
        %v1538 = vmul.f32 %v1484, 1.442695
        %v1539 = vpow.pop %v1538
        %v1540 = vmul.f32 %v1485, 1.442695
        %v1541 = vpow.pop %v1540
        %v1542 = vmul.f32 %v1486, 1.442695
        %v1543 = vpow.pop %v1542
        %v1544 = vmul.f32 %v1487, 1.442695
        %v1545 = vpow.pop %v1544
        %v1546 = vmul.f32 %v1488, 1.442695
        %v1547 = vpow.pop %v1546
        %v1548 = vmul.f32 %v1489, 1.442695
        %v1549 = vpow.pop %v1548
        %v1550 = vmul.f32 %v1490, 1.442695
        %v1551 = vpow.pop %v1550
        %v1552 = vmul.f32 %v1491, 1.442695
        %v1553 = vpow.pop %v1552
        %v1554 = vmul.f32 %v1492, 1.442695
        %v1555 = vpow.pop %v1554
        %v1556 = vmul.f32 %v1493, 1.442695
        %v1557 = vpow.pop %v1556
        %v1558 = vlaneseq
        %v1559 = vand.u32 %v1558, 127
        %vm1560 = vcmp.lt.s32.totalorder %v1559, 8
        %v1561 = vsel %vm1560, %v1495, 0.0
        %v1562 = vsel %vm1560, %v1497, 0.0
        %v1563 = vsel %vm1560, %v1499, 0.0
        %v1564 = vsel %vm1560, %v1501, 0.0
        %v1565 = vsel %vm1560, %v1503, 0.0
        %v1566 = vsel %vm1560, %v1505, 0.0
        %v1567 = vsel %vm1560, %v1507, 0.0
        %v1568 = vsel %vm1560, %v1509, 0.0
        %v1569 = vsel %vm1560, %v1511, 0.0
        %v1570 = vsel %vm1560, %v1513, 0.0
        %v1571 = vsel %vm1560, %v1515, 0.0
        %v1572 = vsel %vm1560, %v1517, 0.0
        %v1573 = vsel %vm1560, %v1519, 0.0
        %v1574 = vsel %vm1560, %v1521, 0.0
        %v1575 = vsel %vm1560, %v1523, 0.0
        %v1576 = vsel %vm1560, %v1525, 0.0
        %v1577 = vsel %vm1560, %v1527, 0.0
        %v1578 = vsel %vm1560, %v1529, 0.0
        %v1579 = vsel %vm1560, %v1531, 0.0
        %v1580 = vsel %vm1560, %v1533, 0.0
        %v1581 = vsel %vm1560, %v1535, 0.0
        %v1582 = vsel %vm1560, %v1537, 0.0
        %v1583 = vsel %vm1560, %v1539, 0.0
        %v1584 = vsel %vm1560, %v1541, 0.0
        %v1585 = vsel %vm1560, %v1543, 0.0
        %v1586 = vsel %vm1560, %v1545, 0.0
        %v1587 = vsel %vm1560, %v1547, 0.0
        %v1588 = vsel %vm1560, %v1549, 0.0
        %v1589 = vsel %vm1560, %v1551, 0.0
        %v1590 = vsel %vm1560, %v1553, 0.0
        %v1591 = vsel %vm1560, %v1555, 0.0
        %v1592 = vsel %vm1560, %v1557, 0.0
        %1593 = vadd.xlane.f32.xlu0 %v1561
        %v1594 = vpop.xlane.xlu0 %1593
        %1595 = vadd.xlane.f32.xlu0 %v1562
        %v1596 = vpop.xlane.xlu0 %1595
        %1597 = vadd.xlane.f32.xlu0 %v1563
        %v1598 = vpop.xlane.xlu0 %1597
        %1599 = vadd.xlane.f32.xlu0 %v1564
        %v1600 = vpop.xlane.xlu0 %1599
        %1601 = vadd.xlane.f32.xlu0 %v1565
        %v1602 = vpop.xlane.xlu0 %1601
        %1603 = vadd.xlane.f32.xlu0 %v1566
        %v1604 = vpop.xlane.xlu0 %1603
        %1605 = vadd.xlane.f32.xlu0 %v1567
        %v1606 = vpop.xlane.xlu0 %1605
        %1607 = vadd.xlane.f32.xlu0 %v1568
        %v1608 = vpop.xlane.xlu0 %1607
        %1609 = vadd.xlane.f32.xlu0 %v1569
        %v1610 = vpop.xlane.xlu0 %1609
        %1611 = vadd.xlane.f32.xlu0 %v1570
        %v1612 = vpop.xlane.xlu0 %1611
        %1613 = vadd.xlane.f32.xlu0 %v1571
        %v1614 = vpop.xlane.xlu0 %1613
        %1615 = vadd.xlane.f32.xlu0 %v1572
        %v1616 = vpop.xlane.xlu0 %1615
        %1617 = vadd.xlane.f32.xlu0 %v1573
        %v1618 = vpop.xlane.xlu0 %1617
        %1619 = vadd.xlane.f32.xlu0 %v1574
        %v1620 = vpop.xlane.xlu0 %1619
        %1621 = vadd.xlane.f32.xlu0 %v1575
        %v1622 = vpop.xlane.xlu0 %1621
        %1623 = vadd.xlane.f32.xlu0 %v1576
        %v1624 = vpop.xlane.xlu0 %1623
        %1625 = vadd.xlane.f32.xlu0 %v1577
        %v1626 = vpop.xlane.xlu0 %1625
        %1627 = vadd.xlane.f32.xlu0 %v1578
        %v1628 = vpop.xlane.xlu0 %1627
        %1629 = vadd.xlane.f32.xlu0 %v1579
        %v1630 = vpop.xlane.xlu0 %1629
        %1631 = vadd.xlane.f32.xlu0 %v1580
        %v1632 = vpop.xlane.xlu0 %1631
        %1633 = vadd.xlane.f32.xlu0 %v1581
        %v1634 = vpop.xlane.xlu0 %1633
        %1635 = vadd.xlane.f32.xlu0 %v1582
        %v1636 = vpop.xlane.xlu0 %1635
        %1637 = vadd.xlane.f32.xlu0 %v1583
        %v1638 = vpop.xlane.xlu0 %1637
        %1639 = vadd.xlane.f32.xlu0 %v1584
        %v1640 = vpop.xlane.xlu0 %1639
        %1641 = vadd.xlane.f32.xlu0 %v1585
        %v1642 = vpop.xlane.xlu0 %1641
        %1643 = vadd.xlane.f32.xlu0 %v1586
        %v1644 = vpop.xlane.xlu0 %1643
        %1645 = vadd.xlane.f32.xlu0 %v1587
        %v1646 = vpop.xlane.xlu0 %1645
        %1647 = vadd.xlane.f32.xlu0 %v1588
        %v1648 = vpop.xlane.xlu0 %1647
        %1649 = vadd.xlane.f32.xlu0 %v1589
        %v1650 = vpop.xlane.xlu0 %1649
        %1651 = vadd.xlane.f32.xlu0 %v1590
        %v1652 = vpop.xlane.xlu0 %1651
        %1653 = vadd.xlane.f32.xlu0 %v1591
        %v1654 = vpop.xlane.xlu0 %1653
        %1655 = vadd.xlane.f32.xlu0 %v1592
        %v1656 = vpop.xlane.xlu0 %1655
        %v1657 = vrcp.pop %v1594
        %v1658 = vrcp.pop %v1596
        %v1659 = vrcp.pop %v1598
        %v1660 = vrcp.pop %v1600
        %v1661 = vrcp.pop %v1602
        %v1662 = vrcp.pop %v1604
        %v1663 = vrcp.pop %v1606
        %v1664 = vrcp.pop %v1608
        %v1665 = vrcp.pop %v1610
        %v1666 = vrcp.pop %v1612
        %v1667 = vrcp.pop %v1614
        %v1668 = vrcp.pop %v1616
        %v1669 = vrcp.pop %v1618
        %v1670 = vrcp.pop %v1620
        %v1671 = vrcp.pop %v1622
        %v1672 = vrcp.pop %v1624
        %v1673 = vrcp.pop %v1626
        %v1674 = vrcp.pop %v1628
        %v1675 = vrcp.pop %v1630
        %v1676 = vrcp.pop %v1632
        %v1677 = vrcp.pop %v1634
        %v1678 = vrcp.pop %v1636
        %v1679 = vrcp.pop %v1638
        %v1680 = vrcp.pop %v1640
        %v1681 = vrcp.pop %v1642
        %v1682 = vrcp.pop %v1644
        %v1683 = vrcp.pop %v1646
        %v1684 = vrcp.pop %v1648
        %v1685 = vrcp.pop %v1650
        %v1686 = vrcp.pop %v1652
        %v1687 = vrcp.pop %v1654
        %v1688 = vrcp.pop %v1656
        %v1689 = vmul.f32 %v1561, %v1657
        %v1690 = vmul.f32 %v1562, %v1658
        %v1691 = vmul.f32 %v1563, %v1659
        %v1692 = vmul.f32 %v1564, %v1660
        %v1693 = vmul.f32 %v1565, %v1661
        %v1694 = vmul.f32 %v1566, %v1662
        %v1695 = vmul.f32 %v1567, %v1663
        %v1696 = vmul.f32 %v1568, %v1664
        %v1697 = vmul.f32 %v1569, %v1665
        %v1698 = vmul.f32 %v1570, %v1666
        %v1699 = vmul.f32 %v1571, %v1667
        %v1700 = vmul.f32 %v1572, %v1668
        %v1701 = vmul.f32 %v1573, %v1669
        %v1702 = vmul.f32 %v1574, %v1670
        %v1703 = vmul.f32 %v1575, %v1671
        %v1704 = vmul.f32 %v1576, %v1672
        %v1705 = vmul.f32 %v1577, %v1673
        %v1706 = vmul.f32 %v1578, %v1674
        %v1707 = vmul.f32 %v1579, %v1675
        %v1708 = vmul.f32 %v1580, %v1676
        %v1709 = vmul.f32 %v1581, %v1677
        %v1710 = vmul.f32 %v1582, %v1678
        %v1711 = vmul.f32 %v1583, %v1679
        %v1712 = vmul.f32 %v1584, %v1680
        %v1713 = vmul.f32 %v1585, %v1681
        %v1714 = vmul.f32 %v1586, %v1682
        %v1715 = vmul.f32 %v1587, %v1683
        %v1716 = vmul.f32 %v1588, %v1684
        %v1717 = vmul.f32 %v1589, %v1685
        %v1718 = vmul.f32 %v1590, %v1686
        %v1719 = vmul.f32 %v1591, %v1687
        %v1720 = vmul.f32 %v1592, %v1688
        %v1721 = vpack.c.bf16 %v1690, %v1689
        %v1722 = vpack.c.bf16 %v1692, %v1691
        %v1723 = vpack.c.bf16 %v1694, %v1693
        %v1724 = vpack.c.bf16 %v1696, %v1695
        %v1725 = vpack.c.bf16 %v1698, %v1697
        %v1726 = vpack.c.bf16 %v1700, %v1699
        %v1727 = vpack.c.bf16 %v1702, %v1701
        %v1728 = vpack.c.bf16 %v1704, %v1703
        %v1729 = vpack.c.bf16 %v1706, %v1705
        %v1730 = vpack.c.bf16 %v1708, %v1707
        %v1731 = vpack.c.bf16 %v1710, %v1709
        %v1732 = vpack.c.bf16 %v1712, %v1711
        %v1733 = vpack.c.bf16 %v1714, %v1713
        %v1734 = vpack.c.bf16 %v1716, %v1715
        %v1735 = vpack.c.bf16 %v1718, %v1717
        %v1736 = vpack.c.bf16 %v1720, %v1719
        %v1753 = vunpack.c.l.b16 %v532
        %v1754 = vunpack.c.l.b16 %v533
        %v1755 = vunpack.c.l.b16 %v534
        %v1756 = vunpack.c.l.b16 %v535
        %v1757 = vunpack.c.l.b16 %v536
        %v1758 = vunpack.c.l.b16 %v537
        %v1759 = vunpack.c.l.b16 %v538
        %v1760 = vunpack.c.l.b16 %v539
        %v1761 = vunpack.c.l.b16 %v540
        %v1762 = vunpack.c.l.b16 %v541
        %v1763 = vunpack.c.l.b16 %v542
        %v1764 = vunpack.c.l.b16 %v543
        %v1765 = vunpack.c.l.b16 %v544
        %v1766 = vunpack.c.l.b16 %v545
        %v1767 = vunpack.c.l.b16 %v546
        %v1768 = vunpack.c.l.b16 %v547
        %v1769 = vpack.c.b16 %v1754, %v1753
        %v1770 = vpack.c.b16 %v1756, %v1755
        %v1771 = vpack.c.b16 %v1758, %v1757
        %v1772 = vpack.c.b16 %v1760, %v1759
        %v1773 = vpack.c.b16 %v1762, %v1761
        %v1774 = vpack.c.b16 %v1764, %v1763
        %v1775 = vpack.c.b16 %v1766, %v1765
        %v1776 = vpack.c.b16 %v1768, %v1767
        %1785 = vmatprep.subr.bf16.mxu0 0
        %1786 = vmatpush1.bf16.msra.mxu0 %v1769
        %1787 = vmatprep.subr.bf16.mxu0 0
        %1788 = vmatpush1.bf16.msra.mxu0 %v1770
        %1789 = vmatprep.subr.bf16.mxu0 0
        %1790 = vmatpush1.bf16.msra.mxu0 %v1771
        %1791 = vmatprep.subr.bf16.mxu0 0
        %1792 = vmatpush1.bf16.msra.mxu0 %v1772
        %1793 = vmatprep.subr.bf16.mxu0 0
        %1794 = vmatpush1.bf16.msra.mxu0 %v1773
        %1795 = vmatprep.subr.bf16.mxu0 0
        %1796 = vmatpush1.bf16.msra.mxu0 %v1774
        %1797 = vmatprep.subr.bf16.mxu0 0
        %1798 = vmatpush1.bf16.msra.mxu0 %v1775
        %1799 = vmatprep.subr.bf16.mxu0 0
        %1800 = vmatpush1.bf16.msra.mxu0 %v1776
        %1801 = vmatprep.subr.bf16.mxu0 0
        %1802 = vmatpush1.bf16.msra.mxu0 0
        %1803 = vmatprep.subr.bf16.mxu0 0
        %1804 = vmatpush1.bf16.msra.mxu0 0
        %1805 = vmatprep.subr.bf16.mxu0 0
        %1806 = vmatpush1.bf16.msra.mxu0 0
        %1807 = vmatprep.subr.bf16.mxu0 0
        %1808 = vmatpush1.bf16.msra.mxu0 0
        %1809 = vmatprep.subr.bf16.mxu0 0
        %1810 = vmatpush1.bf16.msra.mxu0 0
        %1811 = vmatprep.subr.bf16.mxu0 0
        %1812 = vmatpush1.bf16.msra.mxu0 0
        %1813 = vmatprep.subr.bf16.mxu0 0
        %1814 = vmatpush1.bf16.msra.mxu0 0
        %1815 = vmatprep.subr.bf16.mxu0 0
        %1816 = vmatpush1.bf16.msra.mxu0 0
        %1817 = vmatprep.mubr.bf16.mxu0 0
        %1818 = vmatmul.mubr.bf16.gmra.mrb[0].mxu0 %v1721
        %v1819 = vpop.f32.mrb[0].mxu0
        %v1820 = vadd.f32 0.0, %v1819
        %v1821 = vpop.f32.mrb[0].mxu0
        %v1822 = vpop.f32.mrb[0].mxu0
        %v1823 = vadd.f32 0.0, %v1822
        %v1824 = vpop.f32.mrb[0].mxu0
        %1825 = vmatprep.mubr.bf16.mxu0 0
        %1826 = vmatmul.mubr.bf16.gmra.mrb[0].mxu0 %v1722
        %v1827 = vpop.f32.mrb[0].mxu0
        %v1828 = vadd.f32 0.0, %v1827
        %v1829 = vpop.f32.mrb[0].mxu0
        %v1830 = vpop.f32.mrb[0].mxu0
        %v1831 = vadd.f32 0.0, %v1830
        %v1832 = vpop.f32.mrb[0].mxu0
        %1833 = vmatprep.mubr.bf16.mxu0 0
        %1834 = vmatmul.mubr.bf16.gmra.mrb[0].mxu0 %v1723
        %v1835 = vpop.f32.mrb[0].mxu0
        %v1836 = vadd.f32 0.0, %v1835
        %v1837 = vpop.f32.mrb[0].mxu0
        %v1838 = vpop.f32.mrb[0].mxu0
        %v1839 = vadd.f32 0.0, %v1838
        %v1840 = vpop.f32.mrb[0].mxu0
        %1841 = vmatprep.mubr.bf16.mxu0 0
        %1842 = vmatmul.mubr.bf16.gmra.mrb[0].mxu0 %v1724
        %v1843 = vpop.f32.mrb[0].mxu0
        %v1844 = vadd.f32 0.0, %v1843
        %v1845 = vpop.f32.mrb[0].mxu0
        %v1846 = vpop.f32.mrb[0].mxu0
        %v1847 = vadd.f32 0.0, %v1846
        %v1848 = vpop.f32.mrb[0].mxu0
        %1849 = vmatprep.mubr.bf16.mxu0 0
        %1850 = vmatmul.mubr.bf16.gmra.mrb[0].mxu0 %v1725
        %v1851 = vpop.f32.mrb[0].mxu0
        %v1852 = vadd.f32 0.0, %v1851
        %v1853 = vpop.f32.mrb[0].mxu0
        %v1854 = vpop.f32.mrb[0].mxu0
        %v1855 = vadd.f32 0.0, %v1854
        %v1856 = vpop.f32.mrb[0].mxu0
        %1857 = vmatprep.mubr.bf16.mxu0 0
        %1858 = vmatmul.mubr.bf16.gmra.mrb[0].mxu0 %v1726
        %v1859 = vpop.f32.mrb[0].mxu0
        %v1860 = vadd.f32 0.0, %v1859
        %v1861 = vpop.f32.mrb[0].mxu0
        %v1862 = vpop.f32.mrb[0].mxu0
        %v1863 = vadd.f32 0.0, %v1862
        %v1864 = vpop.f32.mrb[0].mxu0
        %1865 = vmatprep.mubr.bf16.mxu0 0
        %1866 = vmatmul.mubr.bf16.gmra.mrb[0].mxu0 %v1727
        %v1867 = vpop.f32.mrb[0].mxu0
        %v1868 = vadd.f32 0.0, %v1867
        %v1869 = vpop.f32.mrb[0].mxu0
        %v1870 = vpop.f32.mrb[0].mxu0
        %v1871 = vadd.f32 0.0, %v1870
        %v1872 = vpop.f32.mrb[0].mxu0
        %1873 = vmatprep.mubr.bf16.mxu0 0
        %1874 = vmatmul.mubr.bf16.gmra.mrb[0].mxu0 %v1728
        %v1875 = vpop.f32.mrb[0].mxu0
        %v1876 = vadd.f32 0.0, %v1875
        %v1877 = vpop.f32.mrb[0].mxu0
        %v1878 = vpop.f32.mrb[0].mxu0
        %v1879 = vadd.f32 0.0, %v1878
        %v1880 = vpop.f32.mrb[0].mxu0
        %1881 = vmatprep.mubr.bf16.mxu0 0
        %1882 = vmatmul.mubr.bf16.gmra.mrb[0].mxu0 %v1729
        %v1883 = vpop.f32.mrb[0].mxu0
        %v1884 = vadd.f32 0.0, %v1883
        %v1885 = vpop.f32.mrb[0].mxu0
        %v1886 = vpop.f32.mrb[0].mxu0
        %v1887 = vadd.f32 0.0, %v1886
        %v1888 = vpop.f32.mrb[0].mxu0
        %1889 = vmatprep.mubr.bf16.mxu0 0
        %1890 = vmatmul.mubr.bf16.gmra.mrb[0].mxu0 %v1730
        %v1891 = vpop.f32.mrb[0].mxu0
        %v1892 = vadd.f32 0.0, %v1891
        %v1893 = vpop.f32.mrb[0].mxu0
        %v1894 = vpop.f32.mrb[0].mxu0
        %v1895 = vadd.f32 0.0, %v1894
        %v1896 = vpop.f32.mrb[0].mxu0
        %1897 = vmatprep.mubr.bf16.mxu0 0
        %1898 = vmatmul.mubr.bf16.gmra.mrb[0].mxu0 %v1731
        %v1899 = vpop.f32.mrb[0].mxu0
        %v1900 = vadd.f32 0.0, %v1899
        %v1901 = vpop.f32.mrb[0].mxu0
        %v1902 = vpop.f32.mrb[0].mxu0
        %v1903 = vadd.f32 0.0, %v1902
        %v1904 = vpop.f32.mrb[0].mxu0
        %1905 = vmatprep.mubr.bf16.mxu0 0
        %1906 = vmatmul.mubr.bf16.gmra.mrb[0].mxu0 %v1732
        %v1907 = vpop.f32.mrb[0].mxu0
        %v1908 = vadd.f32 0.0, %v1907
        %v1909 = vpop.f32.mrb[0].mxu0
        %v1910 = vpop.f32.mrb[0].mxu0
        %v1911 = vadd.f32 0.0, %v1910
        %v1912 = vpop.f32.mrb[0].mxu0
        %1913 = vmatprep.mubr.bf16.mxu0 0
        %1914 = vmatmul.mubr.bf16.gmra.mrb[0].mxu0 %v1733
        %v1915 = vpop.f32.mrb[0].mxu0
        %v1916 = vadd.f32 0.0, %v1915
        %v1917 = vpop.f32.mrb[0].mxu0
        %v1918 = vpop.f32.mrb[0].mxu0
        %v1919 = vadd.f32 0.0, %v1918
        %v1920 = vpop.f32.mrb[0].mxu0
        %1921 = vmatprep.mubr.bf16.mxu0 0
        %1922 = vmatmul.mubr.bf16.gmra.mrb[0].mxu0 %v1734
        %v1923 = vpop.f32.mrb[0].mxu0
        %v1924 = vadd.f32 0.0, %v1923
        %v1925 = vpop.f32.mrb[0].mxu0
        %v1926 = vpop.f32.mrb[0].mxu0
        %v1927 = vadd.f32 0.0, %v1926
        %v1928 = vpop.f32.mrb[0].mxu0
        %1929 = vmatprep.mubr.bf16.mxu0 0
        %1930 = vmatmul.mubr.bf16.gmra.mrb[0].mxu0 %v1735
        %v1931 = vpop.f32.mrb[0].mxu0
        %v1932 = vadd.f32 0.0, %v1931
        %v1933 = vpop.f32.mrb[0].mxu0
        %v1934 = vpop.f32.mrb[0].mxu0
        %v1935 = vadd.f32 0.0, %v1934
        %v1936 = vpop.f32.mrb[0].mxu0
        %1937 = vmatprep.mubr.bf16.mxu0 0
        %1938 = vmatmul.mubr.bf16.gmra.mrb[0].mxu0 %v1736
        %v1939 = vpop.f32.mrb[0].mxu0
        %v1940 = vadd.f32 0.0, %v1939
        %v1941 = vpop.f32.mrb[0].mxu0
        %v1942 = vpop.f32.mrb[0].mxu0
        %v1943 = vadd.f32 0.0, %v1942
        %v1944 = vpop.f32.mrb[0].mxu0
        %1945 = vdwg.mxu0
        %v1946 = vpack.c.bf16 %v1823, %v1820
        %v1947 = vpack.c.bf16 %v1831, %v1828
        %v1948 = vpack.c.bf16 %v1839, %v1836
        %v1949 = vpack.c.bf16 %v1847, %v1844
        %v1950 = vpack.c.bf16 %v1855, %v1852
        %v1951 = vpack.c.bf16 %v1863, %v1860
        %v1952 = vpack.c.bf16 %v1871, %v1868
        %v1953 = vpack.c.bf16 %v1879, %v1876
        %v1954 = vpack.c.bf16 %v1887, %v1884
        %v1955 = vpack.c.bf16 %v1895, %v1892
        %v1956 = vpack.c.bf16 %v1903, %v1900
        %v1957 = vpack.c.bf16 %v1911, %v1908
        %v1958 = vpack.c.bf16 %v1919, %v1916
        %v1959 = vpack.c.bf16 %v1927, %v1924
        %v1960 = vpack.c.bf16 %v1935, %v1932
        %v1961 = vpack.c.bf16 %v1943, %v1940
        %v1962 = vld [vmem:[%s7] sm:$0xf]
        %v1963 = vld [vmem:[%s7 + $0x4] sm:$0xf]
        %v1964 = vld [vmem:[%s7 + $0x8] sm:$0xf]
        %v1965 = vld [vmem:[%s7 + $0xc] sm:$0xf]
        %v1966 = vld [vmem:[%s7 + $0x10] sm:$0xf]
        %v1967 = vld [vmem:[%s7 + $0x14] sm:$0xf]
        %v1968 = vld [vmem:[%s7 + $0x18] sm:$0xf]
        %v1969 = vld [vmem:[%s7 + $0x1c] sm:$0xf]
        %v1970 = vld [vmem:[%s7 + $0x20] sm:$0xf]
        %v1971 = vld [vmem:[%s7 + $0x24] sm:$0xf]
        %v1972 = vld [vmem:[%s7 + $0x28] sm:$0xf]
        %v1973 = vld [vmem:[%s7 + $0x2c] sm:$0xf]
        %v1974 = vld [vmem:[%s7 + $0x30] sm:$0xf]
        %v1975 = vld [vmem:[%s7 + $0x34] sm:$0xf]
        %v1976 = vld [vmem:[%s7 + $0x38] sm:$0xf]
        %v1977 = vld [vmem:[%s7 + $0x3c] sm:$0xf]
        %v1978 = vld [vmem:[%s8] sm:$0x1]
        %v1980 = vlaneseq
        %v1981 = vshrl.u32 %v1980, 7
        %v1982 = vsub.s32 0, %v1981
        %v1983 = vrot.slane %v1978, %v1982
        %v2001 = vunpack.c.l.b16 %v1962
        %v2002 = vunpack.c.l.b16 %v1963
        %v2003 = vunpack.c.l.b16 %v1964
        %v2004 = vunpack.c.l.b16 %v1965
        %v2005 = vunpack.c.l.b16 %v1966
        %v2006 = vunpack.c.l.b16 %v1967
        %v2007 = vunpack.c.l.b16 %v1968
        %v2008 = vunpack.c.l.b16 %v1969
        %v2009 = vunpack.c.l.b16 %v1970
        %v2010 = vunpack.c.l.b16 %v1971
        %v2011 = vunpack.c.l.b16 %v1972
        %v2012 = vunpack.c.l.b16 %v1973
        %v2013 = vunpack.c.l.b16 %v1974
        %v2014 = vunpack.c.l.b16 %v1975
        %v2015 = vunpack.c.l.b16 %v1976
        %v2016 = vunpack.c.l.b16 %v1977
        %v2017 = vpack.c.b16 %v2002, %v2001
        %v2018 = vpack.c.b16 %v2004, %v2003
        %v2019 = vpack.c.b16 %v2006, %v2005
        %v2020 = vpack.c.b16 %v2008, %v2007
        %v2021 = vpack.c.b16 %v2010, %v2009
        %v2022 = vpack.c.b16 %v2012, %v2011
        %v2023 = vpack.c.b16 %v2014, %v2013
        %v2024 = vpack.c.b16 %v2016, %v2015
        %2033 = vmatprep.subr.bf16.mxu0 0
        %2034 = vmatpush1.bf16.msra.mxu0 %v2017
        %2035 = vmatprep.subr.bf16.mxu0 0
        %2036 = vmatpush1.bf16.msra.mxu0 %v2018
        %2037 = vmatprep.subr.bf16.mxu0 0
        %2038 = vmatpush1.bf16.msra.mxu0 %v2019
        %2039 = vmatprep.subr.bf16.mxu0 0
        %2040 = vmatpush1.bf16.msra.mxu0 %v2020
        %2041 = vmatprep.subr.bf16.mxu0 0
        %2042 = vmatpush1.bf16.msra.mxu0 %v2021
        %2043 = vmatprep.subr.bf16.mxu0 0
        %2044 = vmatpush1.bf16.msra.mxu0 %v2022
        %2045 = vmatprep.subr.bf16.mxu0 0
        %2046 = vmatpush1.bf16.msra.mxu0 %v2023
        %2047 = vmatprep.subr.bf16.mxu0 0
        %2048 = vmatpush1.bf16.msra.mxu0 %v2024
        %2049 = vmatprep.subr.bf16.mxu0 0
        %2050 = vmatpush1.bf16.msra.mxu0 0
        %2051 = vmatprep.subr.bf16.mxu0 0
        %2052 = vmatpush1.bf16.msra.mxu0 0
        %2053 = vmatprep.subr.bf16.mxu0 0
        %2054 = vmatpush1.bf16.msra.mxu0 0
        %2055 = vmatprep.subr.bf16.mxu0 0
        %2056 = vmatpush1.bf16.msra.mxu0 0
        %2057 = vmatprep.subr.bf16.mxu0 0
        %2058 = vmatpush1.bf16.msra.mxu0 0
        %2059 = vmatprep.subr.bf16.mxu0 0
        %2060 = vmatpush1.bf16.msra.mxu0 0
        %2061 = vmatprep.subr.bf16.mxu0 0
        %2062 = vmatpush1.bf16.msra.mxu0 0
        %2063 = vmatprep.subr.bf16.mxu0 0
        %2064 = vmatpush1.bf16.msra.mxu0 0
        %2065 = vmatprep.mubr.bf16.mxu0 0
        %2066 = vmatmul.mubr.bf16.gmra.mrb[0].mxu0 %v1946
        %v2067 = vpop.f32.mrb[0].mxu0
        %v2068 = vadd.f32 %v1983, %v2067
        %v2069 = vpop.f32.mrb[0].mxu0
        %v2070 = vpop.f32.mrb[0].mxu0
        %v2071 = vadd.f32 %v1983, %v2070
        %v2072 = vpop.f32.mrb[0].mxu0
        %2073 = vmatprep.mubr.bf16.mxu0 0
        %2074 = vmatmul.mubr.bf16.gmra.mrb[0].mxu0 %v1947
        %v2075 = vpop.f32.mrb[0].mxu0
        %v2076 = vadd.f32 %v1983, %v2075
        %v2077 = vpop.f32.mrb[0].mxu0
        %v2078 = vpop.f32.mrb[0].mxu0
        %v2079 = vadd.f32 %v1983, %v2078
        %v2080 = vpop.f32.mrb[0].mxu0
        %2081 = vmatprep.mubr.bf16.mxu0 0
        %2082 = vmatmul.mubr.bf16.gmra.mrb[0].mxu0 %v1948
        %v2083 = vpop.f32.mrb[0].mxu0
        %v2084 = vadd.f32 %v1983, %v2083
        %v2085 = vpop.f32.mrb[0].mxu0
        %v2086 = vpop.f32.mrb[0].mxu0
        %v2087 = vadd.f32 %v1983, %v2086
        %v2088 = vpop.f32.mrb[0].mxu0
        %2089 = vmatprep.mubr.bf16.mxu0 0
        %2090 = vmatmul.mubr.bf16.gmra.mrb[0].mxu0 %v1949
        %v2091 = vpop.f32.mrb[0].mxu0
        %v2092 = vadd.f32 %v1983, %v2091
        %v2093 = vpop.f32.mrb[0].mxu0
        %v2094 = vpop.f32.mrb[0].mxu0
        %v2095 = vadd.f32 %v1983, %v2094
        %v2096 = vpop.f32.mrb[0].mxu0
        %2097 = vmatprep.mubr.bf16.mxu0 0
        %2098 = vmatmul.mubr.bf16.gmra.mrb[0].mxu0 %v1950
        %v2099 = vpop.f32.mrb[0].mxu0
        %v2100 = vadd.f32 %v1983, %v2099
        %v2101 = vpop.f32.mrb[0].mxu0
        %v2102 = vpop.f32.mrb[0].mxu0
        %v2103 = vadd.f32 %v1983, %v2102
        %v2104 = vpop.f32.mrb[0].mxu0
        %2105 = vmatprep.mubr.bf16.mxu0 0
        %2106 = vmatmul.mubr.bf16.gmra.mrb[0].mxu0 %v1951
        %v2107 = vpop.f32.mrb[0].mxu0
        %v2108 = vadd.f32 %v1983, %v2107
        %v2109 = vpop.f32.mrb[0].mxu0
        %v2110 = vpop.f32.mrb[0].mxu0
        %v2111 = vadd.f32 %v1983, %v2110
        %v2112 = vpop.f32.mrb[0].mxu0
        %2113 = vmatprep.mubr.bf16.mxu0 0
        %2114 = vmatmul.mubr.bf16.gmra.mrb[0].mxu0 %v1952
        %v2115 = vpop.f32.mrb[0].mxu0
        %v2116 = vadd.f32 %v1983, %v2115
        %v2117 = vpop.f32.mrb[0].mxu0
        %v2118 = vpop.f32.mrb[0].mxu0
        %v2119 = vadd.f32 %v1983, %v2118
        %v2120 = vpop.f32.mrb[0].mxu0
        %2121 = vmatprep.mubr.bf16.mxu0 0
        %2122 = vmatmul.mubr.bf16.gmra.mrb[0].mxu0 %v1953
        %v2123 = vpop.f32.mrb[0].mxu0
        %v2124 = vadd.f32 %v1983, %v2123
        %v2125 = vpop.f32.mrb[0].mxu0
        %v2126 = vpop.f32.mrb[0].mxu0
        %v2127 = vadd.f32 %v1983, %v2126
        %v2128 = vpop.f32.mrb[0].mxu0
        %2129 = vmatprep.mubr.bf16.mxu0 0
        %2130 = vmatmul.mubr.bf16.gmra.mrb[0].mxu0 %v1954
        %v2131 = vpop.f32.mrb[0].mxu0
        %v2132 = vadd.f32 %v1983, %v2131
        %v2133 = vpop.f32.mrb[0].mxu0
        %v2134 = vpop.f32.mrb[0].mxu0
        %v2135 = vadd.f32 %v1983, %v2134
        %v2136 = vpop.f32.mrb[0].mxu0
        %2137 = vmatprep.mubr.bf16.mxu0 0
        %2138 = vmatmul.mubr.bf16.gmra.mrb[0].mxu0 %v1955
        %v2139 = vpop.f32.mrb[0].mxu0
        %v2140 = vadd.f32 %v1983, %v2139
        %v2141 = vpop.f32.mrb[0].mxu0
        %v2142 = vpop.f32.mrb[0].mxu0
        %v2143 = vadd.f32 %v1983, %v2142
        %v2144 = vpop.f32.mrb[0].mxu0
        %2145 = vmatprep.mubr.bf16.mxu0 0
        %2146 = vmatmul.mubr.bf16.gmra.mrb[0].mxu0 %v1956
        %v2147 = vpop.f32.mrb[0].mxu0
        %v2148 = vadd.f32 %v1983, %v2147
        %v2149 = vpop.f32.mrb[0].mxu0
        %v2150 = vpop.f32.mrb[0].mxu0
        %v2151 = vadd.f32 %v1983, %v2150
        %v2152 = vpop.f32.mrb[0].mxu0
        %2153 = vmatprep.mubr.bf16.mxu0 0
        %2154 = vmatmul.mubr.bf16.gmra.mrb[0].mxu0 %v1957
        %v2155 = vpop.f32.mrb[0].mxu0
        %v2156 = vadd.f32 %v1983, %v2155
        %v2157 = vpop.f32.mrb[0].mxu0
        %v2158 = vpop.f32.mrb[0].mxu0
        %v2159 = vadd.f32 %v1983, %v2158
        %v2160 = vpop.f32.mrb[0].mxu0
        %2161 = vmatprep.mubr.bf16.mxu0 0
        %2162 = vmatmul.mubr.bf16.gmra.mrb[0].mxu0 %v1958
        %v2163 = vpop.f32.mrb[0].mxu0
        %v2164 = vadd.f32 %v1983, %v2163
        %v2165 = vpop.f32.mrb[0].mxu0
        %v2166 = vpop.f32.mrb[0].mxu0
        %v2167 = vadd.f32 %v1983, %v2166
        %v2168 = vpop.f32.mrb[0].mxu0
        %2169 = vmatprep.mubr.bf16.mxu0 0
        %2170 = vmatmul.mubr.bf16.gmra.mrb[0].mxu0 %v1959
        %v2171 = vpop.f32.mrb[0].mxu0
        %v2172 = vadd.f32 %v1983, %v2171
        %v2173 = vpop.f32.mrb[0].mxu0
        %v2174 = vpop.f32.mrb[0].mxu0
        %v2175 = vadd.f32 %v1983, %v2174
        %v2176 = vpop.f32.mrb[0].mxu0
        %2177 = vmatprep.mubr.bf16.mxu0 0
        %2178 = vmatmul.mubr.bf16.gmra.mrb[0].mxu0 %v1960
        %v2179 = vpop.f32.mrb[0].mxu0
        %v2180 = vadd.f32 %v1983, %v2179
        %v2181 = vpop.f32.mrb[0].mxu0
        %v2182 = vpop.f32.mrb[0].mxu0
        %v2183 = vadd.f32 %v1983, %v2182
        %v2184 = vpop.f32.mrb[0].mxu0
        %2185 = vmatprep.mubr.bf16.mxu0 0
        %2186 = vmatmul.mubr.bf16.gmra.mrb[0].mxu0 %v1961
        %v2187 = vpop.f32.mrb[0].mxu0
        %v2188 = vadd.f32 %v1983, %v2187
        %v2189 = vpop.f32.mrb[0].mxu0
        %v2190 = vpop.f32.mrb[0].mxu0
        %v2191 = vadd.f32 %v1983, %v2190
        %v2192 = vpop.f32.mrb[0].mxu0
        %2193 = vdwg.mxu0
        %v2194 = vmax.f32 %v2068, 0.0
        %v2195 = vmax.f32 %v2071, 0.0
        %v2196 = vmax.f32 %v2076, 0.0
        %v2197 = vmax.f32 %v2079, 0.0
        %v2198 = vmax.f32 %v2084, 0.0
        %v2199 = vmax.f32 %v2087, 0.0
        %v2200 = vmax.f32 %v2092, 0.0
        %v2201 = vmax.f32 %v2095, 0.0
        %v2202 = vmax.f32 %v2100, 0.0
        %v2203 = vmax.f32 %v2103, 0.0
        %v2204 = vmax.f32 %v2108, 0.0
        %v2205 = vmax.f32 %v2111, 0.0
        %v2206 = vmax.f32 %v2116, 0.0
        %v2207 = vmax.f32 %v2119, 0.0
        %v2208 = vmax.f32 %v2124, 0.0
        %v2209 = vmax.f32 %v2127, 0.0
        %v2210 = vmax.f32 %v2132, 0.0
        %v2211 = vmax.f32 %v2135, 0.0
        %v2212 = vmax.f32 %v2140, 0.0
        %v2213 = vmax.f32 %v2143, 0.0
        %v2214 = vmax.f32 %v2148, 0.0
        %v2215 = vmax.f32 %v2151, 0.0
        %v2216 = vmax.f32 %v2156, 0.0
        %v2217 = vmax.f32 %v2159, 0.0
        %v2218 = vmax.f32 %v2164, 0.0
        %v2219 = vmax.f32 %v2167, 0.0
        %v2220 = vmax.f32 %v2172, 0.0
        %v2221 = vmax.f32 %v2175, 0.0
        %v2222 = vmax.f32 %v2180, 0.0
        %v2223 = vmax.f32 %v2183, 0.0
        %v2224 = vmax.f32 %v2188, 0.0
        %v2225 = vmax.f32 %v2191, 0.0
        %v2226 = vpack.c.bf16 %v2195, %v2194
        %v2227 = vpack.c.bf16 %v2197, %v2196
        %v2228 = vpack.c.bf16 %v2199, %v2198
        %v2229 = vpack.c.bf16 %v2201, %v2200
        %v2230 = vpack.c.bf16 %v2203, %v2202
        %v2231 = vpack.c.bf16 %v2205, %v2204
        %v2232 = vpack.c.bf16 %v2207, %v2206
        %v2233 = vpack.c.bf16 %v2209, %v2208
        %v2234 = vpack.c.bf16 %v2211, %v2210
        %v2235 = vpack.c.bf16 %v2213, %v2212
        %v2236 = vpack.c.bf16 %v2215, %v2214
        %v2237 = vpack.c.bf16 %v2217, %v2216
        %v2238 = vpack.c.bf16 %v2219, %v2218
        %v2239 = vpack.c.bf16 %v2221, %v2220
        %v2240 = vpack.c.bf16 %v2223, %v2222
        %v2241 = vpack.c.bf16 %v2225, %v2224
        %v2242 = vld [vmem:[%s9] sm:$0xf]
        %v2243 = vld [vmem:[%s9 + $0x4] sm:$0xf]
        %v2244 = vld [vmem:[%s9 + $0x8] sm:$0xf]
        %v2245 = vld [vmem:[%s9 + $0xc] sm:$0xf]
        %v2246 = vld [vmem:[%s10] sm:$0xf]
        %v2247 = vld [vmem:[%s10 + $0x4] sm:$0xf]
        %v2248 = vld [vmem:[%s10 + $0x8] sm:$0xf]
        %v2249 = vld [vmem:[%s10 + $0xc] sm:$0xf]
        %v2254 = vunpack.c.l.b16 %v2246
        %v2255 = vunpack.c.l.b16 %v2247
        %v2256 = vunpack.c.l.b16 %v2248
        %v2257 = vunpack.c.l.b16 %v2249
        %v2258 = vpack.c.b16 %v2255, %v2254
        %v2259 = vpack.c.b16 %v2257, %v2256
        %2262 = vmatprep.subr.bf16.mxu0 0
        %2263 = vmatpush1.bf16.msra.mxu0 %v2258
        %2264 = vmatprep.subr.bf16.mxu0 0
        %2265 = vmatpush1.bf16.msra.mxu0 %v2259
        %2266 = vmatprep.subr.bf16.mxu0 0
        %2267 = vmatpush1.bf16.msra.mxu0 0
        %2268 = vmatprep.subr.bf16.mxu0 0
        %2269 = vmatpush1.bf16.msra.mxu0 0
        %2270 = vmatprep.subr.bf16.mxu0 0
        %2271 = vmatpush1.bf16.msra.mxu0 0
        %2272 = vmatprep.subr.bf16.mxu0 0
        %2273 = vmatpush1.bf16.msra.mxu0 0
        %2274 = vmatprep.subr.bf16.mxu0 0
        %2275 = vmatpush1.bf16.msra.mxu0 0
        %2276 = vmatprep.subr.bf16.mxu0 0
        %2277 = vmatpush1.bf16.msra.mxu0 0
        %2278 = vmatprep.subr.bf16.mxu0 0
        %2279 = vmatpush1.bf16.msra.mxu0 0
        %2280 = vmatprep.subr.bf16.mxu0 0
        %2281 = vmatpush1.bf16.msra.mxu0 0
        %2282 = vmatprep.subr.bf16.mxu0 0
        %2283 = vmatpush1.bf16.msra.mxu0 0
        %2284 = vmatprep.subr.bf16.mxu0 0
        %2285 = vmatpush1.bf16.msra.mxu0 0
        %2286 = vmatprep.subr.bf16.mxu0 0
        %2287 = vmatpush1.bf16.msra.mxu0 0
        %2288 = vmatprep.subr.bf16.mxu0 0
        %2289 = vmatpush1.bf16.msra.mxu0 0
        %2290 = vmatprep.subr.bf16.mxu0 0
        %2291 = vmatpush1.bf16.msra.mxu0 0
        %2292 = vmatprep.subr.bf16.mxu0 0
        %2293 = vmatpush1.bf16.msra.mxu0 0
        %2294 = vmatprep.mubr.bf16.mxu0 0
        %2295 = vmatmul.mubr.bf16.gmra.mrb[0].mxu0 %v653
        %v2296 = vpop.f32.mrb[0].mxu0
        %v2297 = vadd.f32 0.0, %v2296
        %v2298 = vpop.f32.mrb[0].mxu0
        %v2299 = vpop.f32.mrb[0].mxu0
        %v2300 = vadd.f32 0.0, %v2299
        %v2301 = vpop.f32.mrb[0].mxu0
        %2302 = vmatprep.mubr.bf16.mxu0 0
        %2303 = vmatmul.mubr.bf16.gmra.mrb[0].mxu0 %v656
        %v2304 = vpop.f32.mrb[0].mxu0
        %v2305 = vadd.f32 0.0, %v2304
        %v2306 = vpop.f32.mrb[0].mxu0
        %v2307 = vpop.f32.mrb[0].mxu0
        %v2308 = vadd.f32 0.0, %v2307
        %v2309 = vpop.f32.mrb[0].mxu0
        %2310 = vmatprep.mubr.bf16.mxu0 0
        %2311 = vmatmul.mubr.bf16.gmra.mrb[0].mxu0 %v659
        %v2312 = vpop.f32.mrb[0].mxu0
        %v2313 = vadd.f32 0.0, %v2312
        %v2314 = vpop.f32.mrb[0].mxu0
        %v2315 = vpop.f32.mrb[0].mxu0
        %v2316 = vadd.f32 0.0, %v2315
        %v2317 = vpop.f32.mrb[0].mxu0
        %2318 = vmatprep.mubr.bf16.mxu0 0
        %2319 = vmatmul.mubr.bf16.gmra.mrb[0].mxu0 %v662
        %v2320 = vpop.f32.mrb[0].mxu0
        %v2321 = vadd.f32 0.0, %v2320
        %v2322 = vpop.f32.mrb[0].mxu0
        %v2323 = vpop.f32.mrb[0].mxu0
        %v2324 = vadd.f32 0.0, %v2323
        %v2325 = vpop.f32.mrb[0].mxu0
        %2326 = vmatprep.mubr.bf16.mxu0 0
        %2327 = vmatmul.mubr.bf16.gmra.mrb[0].mxu0 %v665
        %v2328 = vpop.f32.mrb[0].mxu0
        %v2329 = vadd.f32 0.0, %v2328
        %v2330 = vpop.f32.mrb[0].mxu0
        %v2331 = vpop.f32.mrb[0].mxu0
        %v2332 = vadd.f32 0.0, %v2331
        %v2333 = vpop.f32.mrb[0].mxu0
        %2334 = vmatprep.mubr.bf16.mxu0 0
        %2335 = vmatmul.mubr.bf16.gmra.mrb[0].mxu0 %v668
        %v2336 = vpop.f32.mrb[0].mxu0
        %v2337 = vadd.f32 0.0, %v2336
        %v2338 = vpop.f32.mrb[0].mxu0
        %v2339 = vpop.f32.mrb[0].mxu0
        %v2340 = vadd.f32 0.0, %v2339
        %v2341 = vpop.f32.mrb[0].mxu0
        %2342 = vmatprep.mubr.bf16.mxu0 0
        %2343 = vmatmul.mubr.bf16.gmra.mrb[0].mxu0 %v671
        %v2344 = vpop.f32.mrb[0].mxu0
        %v2345 = vadd.f32 0.0, %v2344
        %v2346 = vpop.f32.mrb[0].mxu0
        %v2347 = vpop.f32.mrb[0].mxu0
        %v2348 = vadd.f32 0.0, %v2347
        %v2349 = vpop.f32.mrb[0].mxu0
        %2350 = vmatprep.mubr.bf16.mxu0 0
        %2351 = vmatmul.mubr.bf16.gmra.mrb[0].mxu0 %v674
        %v2352 = vpop.f32.mrb[0].mxu0
        %v2353 = vadd.f32 0.0, %v2352
        %v2354 = vpop.f32.mrb[0].mxu0
        %v2355 = vpop.f32.mrb[0].mxu0
        %v2356 = vadd.f32 0.0, %v2355
        %v2357 = vpop.f32.mrb[0].mxu0
        %2358 = vmatprep.mubr.bf16.mxu0 0
        %2359 = vmatmul.mubr.bf16.gmra.mrb[0].mxu0 %v677
        %v2360 = vpop.f32.mrb[0].mxu0
        %v2361 = vadd.f32 0.0, %v2360
        %v2362 = vpop.f32.mrb[0].mxu0
        %v2363 = vpop.f32.mrb[0].mxu0
        %v2364 = vadd.f32 0.0, %v2363
        %v2365 = vpop.f32.mrb[0].mxu0
        %2366 = vmatprep.mubr.bf16.mxu0 0
        %2367 = vmatmul.mubr.bf16.gmra.mrb[0].mxu0 %v680
        %v2368 = vpop.f32.mrb[0].mxu0
        %v2369 = vadd.f32 0.0, %v2368
        %v2370 = vpop.f32.mrb[0].mxu0
        %v2371 = vpop.f32.mrb[0].mxu0
        %v2372 = vadd.f32 0.0, %v2371
        %v2373 = vpop.f32.mrb[0].mxu0
        %2374 = vmatprep.mubr.bf16.mxu0 0
        %2375 = vmatmul.mubr.bf16.gmra.mrb[0].mxu0 %v683
        %v2376 = vpop.f32.mrb[0].mxu0
        %v2377 = vadd.f32 0.0, %v2376
        %v2378 = vpop.f32.mrb[0].mxu0
        %v2379 = vpop.f32.mrb[0].mxu0
        %v2380 = vadd.f32 0.0, %v2379
        %v2381 = vpop.f32.mrb[0].mxu0
        %2382 = vmatprep.mubr.bf16.mxu0 0
        %2383 = vmatmul.mubr.bf16.gmra.mrb[0].mxu0 %v686
        %v2384 = vpop.f32.mrb[0].mxu0
        %v2385 = vadd.f32 0.0, %v2384
        %v2386 = vpop.f32.mrb[0].mxu0
        %v2387 = vpop.f32.mrb[0].mxu0
        %v2388 = vadd.f32 0.0, %v2387
        %v2389 = vpop.f32.mrb[0].mxu0
        %2390 = vmatprep.mubr.bf16.mxu0 0
        %2391 = vmatmul.mubr.bf16.gmra.mrb[0].mxu0 %v689
        %v2392 = vpop.f32.mrb[0].mxu0
        %v2393 = vadd.f32 0.0, %v2392
        %v2394 = vpop.f32.mrb[0].mxu0
        %v2395 = vpop.f32.mrb[0].mxu0
        %v2396 = vadd.f32 0.0, %v2395
        %v2397 = vpop.f32.mrb[0].mxu0
        %2398 = vmatprep.mubr.bf16.mxu0 0
        %2399 = vmatmul.mubr.bf16.gmra.mrb[0].mxu0 %v692
        %v2400 = vpop.f32.mrb[0].mxu0
        %v2401 = vadd.f32 0.0, %v2400
        %v2402 = vpop.f32.mrb[0].mxu0
        %v2403 = vpop.f32.mrb[0].mxu0
        %v2404 = vadd.f32 0.0, %v2403
        %v2405 = vpop.f32.mrb[0].mxu0
        %2406 = vmatprep.mubr.bf16.mxu0 0
        %2407 = vmatmul.mubr.bf16.gmra.mrb[0].mxu0 %v695
        %v2408 = vpop.f32.mrb[0].mxu0
        %v2409 = vadd.f32 0.0, %v2408
        %v2410 = vpop.f32.mrb[0].mxu0
        %v2411 = vpop.f32.mrb[0].mxu0
        %v2412 = vadd.f32 0.0, %v2411
        %v2413 = vpop.f32.mrb[0].mxu0
        %2414 = vmatprep.mubr.bf16.mxu0 0
        %2415 = vmatmul.mubr.bf16.gmra.mrb[0].mxu0 %v698
        %v2416 = vpop.f32.mrb[0].mxu0
        %v2417 = vadd.f32 0.0, %v2416
        %v2418 = vpop.f32.mrb[0].mxu0
        %v2419 = vpop.f32.mrb[0].mxu0
        %v2420 = vadd.f32 0.0, %v2419
        %v2421 = vpop.f32.mrb[0].mxu0
        %2422 = vdwg.mxu0
        %v2427 = vunpack.c.l.b16 %v2242
        %v2428 = vunpack.c.l.b16 %v2243
        %v2429 = vunpack.c.l.b16 %v2244
        %v2430 = vunpack.c.l.b16 %v2245
        %v2431 = vpack.c.b16 %v2428, %v2427
        %v2432 = vpack.c.b16 %v2430, %v2429
        %v2436 = vsel %vm651, %v2226, 0
        %v2439 = vsel %vm651, %v2227, 0
        %v2442 = vsel %vm651, %v2228, 0
        %v2445 = vsel %vm651, %v2229, 0
        %v2448 = vsel %vm651, %v2230, 0
        %v2451 = vsel %vm651, %v2231, 0
        %v2454 = vsel %vm651, %v2232, 0
        %v2457 = vsel %vm651, %v2233, 0
        %v2460 = vsel %vm651, %v2234, 0
        %v2463 = vsel %vm651, %v2235, 0
        %v2466 = vsel %vm651, %v2236, 0
        %v2469 = vsel %vm651, %v2237, 0
        %v2472 = vsel %vm651, %v2238, 0
        %v2475 = vsel %vm651, %v2239, 0
        %v2478 = vsel %vm651, %v2240, 0
        %v2481 = vsel %vm651, %v2241, 0
        %2483 = vmatprep.subr.bf16.mxu0 0
        %2484 = vmatpush1.bf16.msra.mxu0 %v2431
        %2485 = vmatprep.subr.bf16.mxu0 0
        %2486 = vmatpush1.bf16.msra.mxu0 %v2432
        %2487 = vmatprep.subr.bf16.mxu0 0
        %2488 = vmatpush1.bf16.msra.mxu0 0
        %2489 = vmatprep.subr.bf16.mxu0 0
        %2490 = vmatpush1.bf16.msra.mxu0 0
        %2491 = vmatprep.subr.bf16.mxu0 0
        %2492 = vmatpush1.bf16.msra.mxu0 0
        %2493 = vmatprep.subr.bf16.mxu0 0
        %2494 = vmatpush1.bf16.msra.mxu0 0
        %2495 = vmatprep.subr.bf16.mxu0 0
        %2496 = vmatpush1.bf16.msra.mxu0 0
        %2497 = vmatprep.subr.bf16.mxu0 0
        %2498 = vmatpush1.bf16.msra.mxu0 0
        %2499 = vmatprep.subr.bf16.mxu0 0
        %2500 = vmatpush1.bf16.msra.mxu0 0
        %2501 = vmatprep.subr.bf16.mxu0 0
        %2502 = vmatpush1.bf16.msra.mxu0 0
        %2503 = vmatprep.subr.bf16.mxu0 0
        %2504 = vmatpush1.bf16.msra.mxu0 0
        %2505 = vmatprep.subr.bf16.mxu0 0
        %2506 = vmatpush1.bf16.msra.mxu0 0
        %2507 = vmatprep.subr.bf16.mxu0 0
        %2508 = vmatpush1.bf16.msra.mxu0 0
        %2509 = vmatprep.subr.bf16.mxu0 0
        %2510 = vmatpush1.bf16.msra.mxu0 0
        %2511 = vmatprep.subr.bf16.mxu0 0
        %2512 = vmatpush1.bf16.msra.mxu0 0
        %2513 = vmatprep.subr.bf16.mxu0 0
        %2514 = vmatpush1.bf16.msra.mxu0 0
        %2515 = vmatprep.mubr.bf16.mxu0 0
        %2516 = vmatmul.mubr.bf16.gmra.mrb[0].mxu0 %v2436
        %v2517 = vpop.f32.mrb[0].mxu0
        %v2518 = vadd.f32 %v2297, %v2517
        %v2519 = vpop.f32.mrb[0].mxu0
        %v2520 = vpop.f32.mrb[0].mxu0
        %v2521 = vadd.f32 %v2300, %v2520
        %v2522 = vpop.f32.mrb[0].mxu0
        %2523 = vmatprep.mubr.bf16.mxu0 0
        %2524 = vmatmul.mubr.bf16.gmra.mrb[0].mxu0 %v2439
        %v2525 = vpop.f32.mrb[0].mxu0
        %v2526 = vadd.f32 %v2305, %v2525
        %v2527 = vpop.f32.mrb[0].mxu0
        %v2528 = vpop.f32.mrb[0].mxu0
        %v2529 = vadd.f32 %v2308, %v2528
        %v2530 = vpop.f32.mrb[0].mxu0
        %2531 = vmatprep.mubr.bf16.mxu0 0
        %2532 = vmatmul.mubr.bf16.gmra.mrb[0].mxu0 %v2442
        %v2533 = vpop.f32.mrb[0].mxu0
        %v2534 = vadd.f32 %v2313, %v2533
        %v2535 = vpop.f32.mrb[0].mxu0
        %v2536 = vpop.f32.mrb[0].mxu0
        %v2537 = vadd.f32 %v2316, %v2536
        %v2538 = vpop.f32.mrb[0].mxu0
        %2539 = vmatprep.mubr.bf16.mxu0 0
        %2540 = vmatmul.mubr.bf16.gmra.mrb[0].mxu0 %v2445
        %v2541 = vpop.f32.mrb[0].mxu0
        %v2542 = vadd.f32 %v2321, %v2541
        %v2543 = vpop.f32.mrb[0].mxu0
        %v2544 = vpop.f32.mrb[0].mxu0
        %v2545 = vadd.f32 %v2324, %v2544
        %v2546 = vpop.f32.mrb[0].mxu0
        %2547 = vmatprep.mubr.bf16.mxu0 0
        %2548 = vmatmul.mubr.bf16.gmra.mrb[0].mxu0 %v2448
        %v2549 = vpop.f32.mrb[0].mxu0
        %v2550 = vadd.f32 %v2329, %v2549
        %v2551 = vpop.f32.mrb[0].mxu0
        %v2552 = vpop.f32.mrb[0].mxu0
        %v2553 = vadd.f32 %v2332, %v2552
        %v2554 = vpop.f32.mrb[0].mxu0
        %2555 = vmatprep.mubr.bf16.mxu0 0
        %2556 = vmatmul.mubr.bf16.gmra.mrb[0].mxu0 %v2451
        %v2557 = vpop.f32.mrb[0].mxu0
        %v2558 = vadd.f32 %v2337, %v2557
        %v2559 = vpop.f32.mrb[0].mxu0
        %v2560 = vpop.f32.mrb[0].mxu0
        %v2561 = vadd.f32 %v2340, %v2560
        %v2562 = vpop.f32.mrb[0].mxu0
        %2563 = vmatprep.mubr.bf16.mxu0 0
        %2564 = vmatmul.mubr.bf16.gmra.mrb[0].mxu0 %v2454
        %v2565 = vpop.f32.mrb[0].mxu0
        %v2566 = vadd.f32 %v2345, %v2565
        %v2567 = vpop.f32.mrb[0].mxu0
        %v2568 = vpop.f32.mrb[0].mxu0
        %v2569 = vadd.f32 %v2348, %v2568
        %v2570 = vpop.f32.mrb[0].mxu0
        %2571 = vmatprep.mubr.bf16.mxu0 0
        %2572 = vmatmul.mubr.bf16.gmra.mrb[0].mxu0 %v2457
        %v2573 = vpop.f32.mrb[0].mxu0
        %v2574 = vadd.f32 %v2353, %v2573
        %v2575 = vpop.f32.mrb[0].mxu0
        %v2576 = vpop.f32.mrb[0].mxu0
        %v2577 = vadd.f32 %v2356, %v2576
        %v2578 = vpop.f32.mrb[0].mxu0
        %2579 = vmatprep.mubr.bf16.mxu0 0
        %2580 = vmatmul.mubr.bf16.gmra.mrb[0].mxu0 %v2460
        %v2581 = vpop.f32.mrb[0].mxu0
        %v2582 = vadd.f32 %v2361, %v2581
        %v2583 = vpop.f32.mrb[0].mxu0
        %v2584 = vpop.f32.mrb[0].mxu0
        %v2585 = vadd.f32 %v2364, %v2584
        %v2586 = vpop.f32.mrb[0].mxu0
        %2587 = vmatprep.mubr.bf16.mxu0 0
        %2588 = vmatmul.mubr.bf16.gmra.mrb[0].mxu0 %v2463
        %v2589 = vpop.f32.mrb[0].mxu0
        %v2590 = vadd.f32 %v2369, %v2589
        %v2591 = vpop.f32.mrb[0].mxu0
        %v2592 = vpop.f32.mrb[0].mxu0
        %v2593 = vadd.f32 %v2372, %v2592
        %v2594 = vpop.f32.mrb[0].mxu0
        %2595 = vmatprep.mubr.bf16.mxu0 0
        %2596 = vmatmul.mubr.bf16.gmra.mrb[0].mxu0 %v2466
        %v2597 = vpop.f32.mrb[0].mxu0
        %v2598 = vadd.f32 %v2377, %v2597
        %v2599 = vpop.f32.mrb[0].mxu0
        %v2600 = vpop.f32.mrb[0].mxu0
        %v2601 = vadd.f32 %v2380, %v2600
        %v2602 = vpop.f32.mrb[0].mxu0
        %2603 = vmatprep.mubr.bf16.mxu0 0
        %2604 = vmatmul.mubr.bf16.gmra.mrb[0].mxu0 %v2469
        %v2605 = vpop.f32.mrb[0].mxu0
        %v2606 = vadd.f32 %v2385, %v2605
        %v2607 = vpop.f32.mrb[0].mxu0
        %v2608 = vpop.f32.mrb[0].mxu0
        %v2609 = vadd.f32 %v2388, %v2608
        %v2610 = vpop.f32.mrb[0].mxu0
        %2611 = vmatprep.mubr.bf16.mxu0 0
        %2612 = vmatmul.mubr.bf16.gmra.mrb[0].mxu0 %v2472
        %v2613 = vpop.f32.mrb[0].mxu0
        %v2614 = vadd.f32 %v2393, %v2613
        %v2615 = vpop.f32.mrb[0].mxu0
        %v2616 = vpop.f32.mrb[0].mxu0
        %v2617 = vadd.f32 %v2396, %v2616
        %v2618 = vpop.f32.mrb[0].mxu0
        %2619 = vmatprep.mubr.bf16.mxu0 0
        %2620 = vmatmul.mubr.bf16.gmra.mrb[0].mxu0 %v2475
        %v2621 = vpop.f32.mrb[0].mxu0
        %v2622 = vadd.f32 %v2401, %v2621
        %v2623 = vpop.f32.mrb[0].mxu0
        %v2624 = vpop.f32.mrb[0].mxu0
        %v2625 = vadd.f32 %v2404, %v2624
        %v2626 = vpop.f32.mrb[0].mxu0
        %2627 = vmatprep.mubr.bf16.mxu0 0
        %2628 = vmatmul.mubr.bf16.gmra.mrb[0].mxu0 %v2478
        %v2629 = vpop.f32.mrb[0].mxu0
        %v2630 = vadd.f32 %v2409, %v2629
        %v2631 = vpop.f32.mrb[0].mxu0
        %v2632 = vpop.f32.mrb[0].mxu0
        %v2633 = vadd.f32 %v2412, %v2632
        %v2634 = vpop.f32.mrb[0].mxu0
        %2635 = vmatprep.mubr.bf16.mxu0 0
        %2636 = vmatmul.mubr.bf16.gmra.mrb[0].mxu0 %v2481
        %v2637 = vpop.f32.mrb[0].mxu0
        %v2638 = vadd.f32 %v2417, %v2637
        %v2639 = vpop.f32.mrb[0].mxu0
        %v2640 = vpop.f32.mrb[0].mxu0
        %v2641 = vadd.f32 %v2420, %v2640
        %v2642 = vpop.f32.mrb[0].mxu0
        %2643 = vdwg.mxu0
        %v2644 = vld [vmem:[%s11] sm:$0x1]
        %v2646 = vlaneseq
        %v2647 = vshrl.u32 %v2646, 7
        %v2648 = vsub.s32 0, %v2647
        %v2649 = vrot.slane %v2644, %v2648
        %v2651 = vadd.f32 %v2518, %v2649
        %v2652 = vadd.f32 %v2521, %v2649
        %v2653 = vadd.f32 %v2526, %v2649
        %v2654 = vadd.f32 %v2529, %v2649
        %v2655 = vadd.f32 %v2534, %v2649
        %v2656 = vadd.f32 %v2537, %v2649
        %v2657 = vadd.f32 %v2542, %v2649
        %v2658 = vadd.f32 %v2545, %v2649
        %v2659 = vadd.f32 %v2550, %v2649
        %v2660 = vadd.f32 %v2553, %v2649
        %v2661 = vadd.f32 %v2558, %v2649
        %v2662 = vadd.f32 %v2561, %v2649
        %v2663 = vadd.f32 %v2566, %v2649
        %v2664 = vadd.f32 %v2569, %v2649
        %v2665 = vadd.f32 %v2574, %v2649
        %v2666 = vadd.f32 %v2577, %v2649
        %v2667 = vadd.f32 %v2582, %v2649
        %v2668 = vadd.f32 %v2585, %v2649
        %v2669 = vadd.f32 %v2590, %v2649
        %v2670 = vadd.f32 %v2593, %v2649
        %v2671 = vadd.f32 %v2598, %v2649
        %v2672 = vadd.f32 %v2601, %v2649
        %v2673 = vadd.f32 %v2606, %v2649
        %v2674 = vadd.f32 %v2609, %v2649
        %v2675 = vadd.f32 %v2614, %v2649
        %v2676 = vadd.f32 %v2617, %v2649
        %v2677 = vadd.f32 %v2622, %v2649
        %v2678 = vadd.f32 %v2625, %v2649
        %v2679 = vadd.f32 %v2630, %v2649
        %v2680 = vadd.f32 %v2633, %v2649
        %v2681 = vadd.f32 %v2638, %v2649
        %v2682 = vadd.f32 %v2641, %v2649
        %v2683 = vmax.f32 %v2651, 0.0
        %v2684 = vmax.f32 %v2652, 0.0
        %v2685 = vmax.f32 %v2653, 0.0
        %v2686 = vmax.f32 %v2654, 0.0
        %v2687 = vmax.f32 %v2655, 0.0
        %v2688 = vmax.f32 %v2656, 0.0
        %v2689 = vmax.f32 %v2657, 0.0
        %v2690 = vmax.f32 %v2658, 0.0
        %v2691 = vmax.f32 %v2659, 0.0
        %v2692 = vmax.f32 %v2660, 0.0
        %v2693 = vmax.f32 %v2661, 0.0
        %v2694 = vmax.f32 %v2662, 0.0
        %v2695 = vmax.f32 %v2663, 0.0
        %v2696 = vmax.f32 %v2664, 0.0
        %v2697 = vmax.f32 %v2665, 0.0
        %v2698 = vmax.f32 %v2666, 0.0
        %v2699 = vmax.f32 %v2667, 0.0
        %v2700 = vmax.f32 %v2668, 0.0
        %v2701 = vmax.f32 %v2669, 0.0
        %v2702 = vmax.f32 %v2670, 0.0
        %v2703 = vmax.f32 %v2671, 0.0
        %v2704 = vmax.f32 %v2672, 0.0
        %v2705 = vmax.f32 %v2673, 0.0
        %v2706 = vmax.f32 %v2674, 0.0
        %v2707 = vmax.f32 %v2675, 0.0
        %v2708 = vmax.f32 %v2676, 0.0
        %v2709 = vmax.f32 %v2677, 0.0
        %v2710 = vmax.f32 %v2678, 0.0
        %v2711 = vmax.f32 %v2679, 0.0
        %v2712 = vmax.f32 %v2680, 0.0
        %v2713 = vmax.f32 %v2681, 0.0
        %v2714 = vmax.f32 %v2682, 0.0
        %2715 = vst [vmem:[%s461] sm:$0xff] %v2683
        %2716 = vst [vmem:[%s461 + $0x8] sm:$0xff] %v2684
        %2717 = vst [vmem:[%s461 + $0x10] sm:$0xff] %v2685
        %2718 = vst [vmem:[%s461 + $0x18] sm:$0xff] %v2686
        %2719 = vst [vmem:[%s461 + $0x20] sm:$0xff] %v2687
        %2720 = vst [vmem:[%s461 + $0x28] sm:$0xff] %v2688
        %2721 = vst [vmem:[%s461 + $0x30] sm:$0xff] %v2689
        %2722 = vst [vmem:[%s461 + $0x38] sm:$0xff] %v2690
        %2723 = vst [vmem:[%s461 + $0x40] sm:$0xff] %v2691
        %2724 = vst [vmem:[%s461 + $0x48] sm:$0xff] %v2692
        %2725 = vst [vmem:[%s461 + $0x50] sm:$0xff] %v2693
        %2726 = vst [vmem:[%s461 + $0x58] sm:$0xff] %v2694
        %2727 = vst [vmem:[%s461 + $0x60] sm:$0xff] %v2695
        %2728 = vst [vmem:[%s461 + $0x68] sm:$0xff] %v2696
        %2729 = vst [vmem:[%s461 + $0x70] sm:$0xff] %v2697
        %2730 = vst [vmem:[%s461 + $0x78] sm:$0xff] %v2698
        %2731 = vst [vmem:[%s461 + $0x80] sm:$0xff] %v2699
        %2732 = vst [vmem:[%s461 + $0x88] sm:$0xff] %v2700
        %2733 = vst [vmem:[%s461 + $0x90] sm:$0xff] %v2701
        %2734 = vst [vmem:[%s461 + $0x98] sm:$0xff] %v2702
        %2735 = vst [vmem:[%s461 + $0xa0] sm:$0xff] %v2703
        %2736 = vst [vmem:[%s461 + $0xa8] sm:$0xff] %v2704
        %2737 = vst [vmem:[%s461 + $0xb0] sm:$0xff] %v2705
        %2738 = vst [vmem:[%s461 + $0xb8] sm:$0xff] %v2706
        %2739 = vst [vmem:[%s461 + $0xc0] sm:$0xff] %v2707
        %2740 = vst [vmem:[%s461 + $0xc8] sm:$0xff] %v2708
        %2741 = vst [vmem:[%s461 + $0xd0] sm:$0xff] %v2709
        %2742 = vst [vmem:[%s461 + $0xd8] sm:$0xff] %v2710
        %2743 = vst [vmem:[%s461 + $0xe0] sm:$0xff] %v2711
        %2744 = vst [vmem:[%s461 + $0xe8] sm:$0xff] %v2712
        %2745 = vst [vmem:[%s461 + $0xf0] sm:$0xff] %v2713
        %2746 = vst [vmem:[%s461 + $0xf8] sm:$0xff] %v2714
        %s2747 = sand.u32 %s317, 1
        %s2748 = scalar_lea.sflag [#allocation3], %s2747
        %s2749 = sand.u32 %s317, 1
        %s2750 = smul.addr %s2749, 256
        %s2751 = scalar_lea.vmem [#allocation2], %s2750
        // Predicated region
        $region69: #{tpu_custom_call.1} parent=67 // pred_check
          %p2752 = pneg %p327
        $region70: #{tpu_custom_call.1} parent=67 // pred_check_branch
          %2754 = sbr.rel (%p2752) target = $region72
        $region71: #{tpu_custom_call.1} parent=67 // pred_region
          %s2755 = smul.u32 32, %s31
          %s2757 = ssub.s32 4096, 4096
          %2758 = vsyncadd %s2748, %s2757
          %s2759 = smul.addr %s30, 32
          %s2760 = sadd.s32 %s2755, %s2759
          %s2761 = smul.addr %s2760, 128
          %s2762 = scalar_lea.hbm %s12, %s2761
          %s2763 = sshll.u32 %s2751, 4
          %s2764 = int_to_ptr.vmem [resolvable:$true] %s2763
          %2769 = dma.vmem_to_hbm [thread:$0]  %s2764, 4096, %s2762, %s2748, 128, 128, 8
        $region72: #{tpu_custom_call.1} parent=67 // pred_fallthru
          _
      $region68: #{tpu_custom_call.1} parent=5 // pred_fallthru
        _
      %p2770 = scmp.le.s32.totalorder 2, %s21
      // Predicated region
      $region73: #{tpu_custom_call.1} parent=5 // pred_check
        %p2771 = pneg %p2770
      $region74: #{tpu_custom_call.1} parent=5 // pred_check_branch
        %2773 = sbr.rel (%p2771) target = $region76
      $region75: #{tpu_custom_call.1} parent=5 // pred_region
        %s2774 = ssub.s32 %s21, 2
        // Predicated region
        $region77: #{tpu_custom_call.1} parent=75 // pred_check
          %p2775 = pneg %p333
        $region78: #{tpu_custom_call.1} parent=75 // pred_check_branch
          %2777 = sbr.rel (%p2775) target = $region80
        $region79: #{tpu_custom_call.1} parent=75 // pred_region
          %s2778 = sand.u32 %s318, 1
          %s2779 = scalar_lea.sflag [#allocation3], %s2778
          %s2780 = sand.u32 %s318, 1
          %s2781 = smul.addr %s2780, 256
          %s2782 = scalar_lea.vmem [#allocation2], %s2781
          %2783 = dma.done %s2779, 4096
        $region80: #{tpu_custom_call.1} parent=75 // pred_fallthru
          _
      $region76: #{tpu_custom_call.1} parent=5 // pred_fallthru
        _
    $region6: #{tpu_custom_call.1} parent=1 // loop_footer
      %s25 = sadd.s32 1, %s21
    $region7: #{tpu_custom_call.1} parent=1 // loop_footer_branch
      %20 = sbr.rel target = $region3
    $region8: #{tpu_custom_call.1} parent=1 // loop_exit
      _
    %2784 = vsyncpa [#allocation3], 1
    %s2785 = scalar_lea.sflag [#allocation3], 1
    %2786 = vsyncpa %s2785, 1

</llo_original>
